<compile_context>
chip_gen: v7x
topology: tpu7x:2x2x1
jax: 0.10.0
libtpu: 0.0.40
codegen_flags: <defaults>
</compile_context>

<pallas_src>
import jax
import jax.numpy as jnp
from jax import lax
from jax.experimental import pallas as pl
from jax.experimental.pallas import tpu as pltpu

LANE = 128
SUBLANE = 8


def _round_up(x, m):
    return (x + m - 1) // m * m


def _pad2d(a, rows, cols):
    return jnp.pad(a, ((0, rows - a.shape[0]), (0, cols - a.shape[1])))


def _pad1d(a, n):
    return jnp.pad(a, (0, n - a.shape[0]))


def _make_gru_kernel(is_decoder, t_chunk, seq_len):
    """Builds the recurrent kernel.  Static specialization on decoder/encoder."""

    def kernel(*refs):
        if is_decoder:
            (x_ru_ref, x_n_ref, h0_ref, s_ref, w_hru_ref, w_n_ref,
             out_ref, hfin_ref, h_scr) = refs
        else:
            (x_ru_ref, x_n_ref, h0_ref, w_hru_ref, w_n_ref,
             out_ref, hfin_ref, h_scr) = refs
            s_ref = None

        c = pl.program_id(1)          # sequence-chunk index (arbitrary / serial)

        # Initialize the carried hidden state at the start of each batch tile.
        @pl.when(c == 0)
        def _init():
            h_scr[...] = h0_ref[...].astype(jnp.float32)

        w_hru = w_hru_ref[...]        # (Hp, 2*Hp)   fused [Whr | Whu]
        w_n = w_n_ref[...]            # (2*Hp, Hp) decoder [Whn ; Wsn], (Hp, Hp) encoder
        cdt = w_hru.dtype             # MXU operand dtype (bf16 or f32)
        hp = h_scr.shape[1]
        if is_decoder:
            s = s_ref[...].astype(jnp.float32)   # (Bt, Hp), constant over time

        def step(i, h):
            # x / bias / (summary for r,u) contributions were precomputed.
            ru = x_ru_ref[i].astype(jnp.float32) + jnp.dot(
                h.astype(cdt), w_hru, preferred_element_type=jnp.float32)
            r = jax.nn.sigmoid(ru[:, :hp])
            u = jax.nn.sigmoid(ru[:, hp:])
            if is_decoder:
                hs = jnp.concatenate(
                    [(r * h).astype(cdt), (r * s).astype(cdt)], axis=1)
            else:
                hs = (r * h).astype(cdt)
            n = jnp.tanh(x_n_ref[i].astype(jnp.float32) + jnp.dot(
                hs, w_n, preferred_element_type=jnp.float32))
            h_new = u * h + (1.0 - u) * n
            if seq_len % t_chunk != 0:
                # mask padded timesteps so the carried hidden stays correct
                valid = (c * t_chunk + i) < seq_len
                h_new = jnp.where(valid, h_new, h)
            out_ref[i] = h_new.astype(out_ref.dtype)
            return h_new

        h_last = lax.fori_loop(0, t_chunk, step, h_scr[...], unroll=True)
        h_scr[...] = h_last

        # Write the final hidden only once, on the last chunk.
        @pl.when(c == pl.num_programs(1) - 1)
        def _finalize():
            hfin_ref[...] = h_last.astype(hfin_ref.dtype)

    return kernel


def gru_forward(x, hidden, summary, params, *, is_decoder,
                t_chunk=32, compute_dtype=jnp.bfloat16, b_tile=SUBLANE):
    """Forward pass of GRULayer.

    x:       [seq_len, batch, input_size] or [seq_len, input_size]
    hidden:  [batch, hidden_size] / [hidden_size] or None (zeros)
    summary: same layout as hidden (decoder) or None (encoder)
    params:  dict with wxr/whr/wxu/whu/wxn/whn, br/bu/bn and (decoder only)
             wsr/wsu/wsn, pre-split from the PyTorch concat-Linear weights.
    """
    squeeze = (x.ndim == 2)
    if squeeze:
        x = x[:, None, :]
        if hidden is not None:
            hidden = hidden[None, :]
        if summary is not None:
            summary = summary[None, :]

    S, B, I = x.shape
    H = params["whr"].shape[0]
    out_dtype = x.dtype
    if hidden is None:
        hidden = jnp.zeros((B, H), x.dtype)

    Hp = _round_up(H, LANE)
    Bp = _round_up(B, b_tile)
    t_chunk = min(t_chunk, S)
    Sp = _round_up(S, t_chunk)
    n_chunks = Sp // t_chunk
    nb = Bp // b_tile
    cdt = compute_dtype

    # ---- fused + padded recurrent weights (resident in VMEM, bf16-able) ----
    def pw(name):
        return _pad2d(params[name], Hp, Hp)

    w_hru = jnp.concatenate([pw("whr"), pw("whu")], axis=1).astype(cdt)   # (Hp, 2Hp)
    if is_decoder:
        w_n = jnp.concatenate([pw("whn"), pw("wsn")], axis=0).astype(cdt)  # (2Hp, Hp)
    else:
        w_n = pw("whn").astype(cdt)                                        # (Hp, Hp)

    # ---- hoisted input projection: one big matmul over the whole sequence ----
    wx_ru = jnp.concatenate(
        [_pad2d(params["wxr"], I, Hp), _pad2d(params["wxu"], I, Hp)], axis=1)
    wx_n = _pad2d(params["wxn"], I, Hp)
    b_ru = jnp.concatenate([_pad1d(params["br"], Hp), _pad1d(params["bu"], Hp)])
    b_n = _pad1d(params["bn"], Hp)

    x_pad = jnp.pad(x, ((0, Sp - S), (0, Bp - B), (0, 0)))
    x_ru = jnp.einsum("sbi,ih->sbh", x_pad.astype(cdt), wx_ru.astype(cdt),
                      preferred_element_type=jnp.float32)
    x_n = jnp.einsum("sbi,ih->sbh", x_pad.astype(cdt), wx_n.astype(cdt),
                     preferred_element_type=jnp.float32)

    h0_pad = _pad2d(hidden.astype(jnp.float32), Bp, Hp)

    if is_decoder:
        s_pad = _pad2d(summary.astype(jnp.float32), Bp, Hp)
        # summary contribution to reset/update gates is loop-invariant: fold it in.
        ws_ru = jnp.concatenate([pw("wsr"), pw("wsu")], axis=1)
        x_ru = x_ru + (s_pad @ ws_ru + b_ru)[None]
    else:
        x_ru = x_ru + b_ru[None, None]
    x_n = x_n + b_n[None, None]

    # ---- pallas_call ----
    kernel = _make_gru_kernel(is_decoder, t_chunk, S)
    two_hp = 2 * Hp

    in_arrays = [x_ru, x_n, h0_pad]
    in_specs = [
        pl.BlockSpec((t_chunk, b_tile, two_hp), lambda b, c: (c, b, 0)),
        pl.BlockSpec((t_chunk, b_tile, Hp), lambda b, c: (c, b, 0)),
        pl.BlockSpec((b_tile, Hp), lambda b, c: (b, 0)),
    ]
    if is_decoder:
        in_arrays.append(s_pad)
        in_specs.append(pl.BlockSpec((b_tile, Hp), lambda b, c: (b, 0)))
    in_arrays += [w_hru, w_n]
    in_specs += [
        pl.BlockSpec(w_hru.shape, lambda b, c: (0, 0)),
        pl.BlockSpec(w_n.shape, lambda b, c: (0, 0)),
    ]

    out_specs = [
        pl.BlockSpec((t_chunk, b_tile, Hp), lambda b, c: (c, b, 0)),
        pl.BlockSpec((b_tile, Hp), lambda b, c: (b, 0)),
    ]
    out_shapes = (jax.ShapeDtypeStruct((Sp, Bp, Hp), out_dtype),
                  jax.ShapeDtypeStruct((Bp, Hp), out_dtype))

    outputs_p, h_final_p = pl.pallas_call(
        kernel,
        out_shape=out_shapes,
        grid_spec=pltpu.PrefetchScalarGridSpec(
            num_scalar_prefetch=0,
            grid=(nb, n_chunks),
            in_specs=in_specs,
            out_specs=out_specs,
            scratch_shapes=[pltpu.VMEM((b_tile, Hp), jnp.float32)]),
        compiler_params=pltpu.CompilerParams(
            dimension_semantics=("parallel", "arbitrary"),
            vmem_limit_bytes=48 * 1024 * 1024),
    )(*in_arrays)

    outputs = outputs_p[:S, :B, :H]
    h_final = h_final_p[:B, :H]
    if squeeze:
        return outputs[:, 0, :], h_final[0]
    return outputs, h_final


def gru_reference(x, hidden, summary, params, *, is_decoder):
    """Pure-JAX f32 reference mirroring the PyTorch loop."""
    if hidden is None:
        hidden = jnp.zeros((x.shape[1], params["whr"].shape[0]), x.dtype)

    def step(h, xt):
        pre_r = xt @ params["wxr"] + h @ params["whr"] + params["br"]
        pre_u = xt @ params["wxu"] + h @ params["whu"] + params["bu"]
        if is_decoder:
            pre_r = pre_r + summary @ params["wsr"]
            pre_u = pre_u + summary @ params["wsu"]
        r = jax.nn.sigmoid(pre_r)
        u = jax.nn.sigmoid(pre_u)
        pre_n = xt @ params["wxn"] + (r * h) @ params["whn"] + params["bn"]
        if is_decoder:
            pre_n = pre_n + (r * summary) @ params["wsn"]
        n = jnp.tanh(pre_n)
        h_new = u * h + (1.0 - u) * n
        return h_new, h_new

    h_fin, outs = lax.scan(step, hidden, x)
    return outs, h_fin


def make_params(key, input_size, hidden_size, is_decoder, scale=0.1):
    ks = jax.random.split(key, 12)

    def w(k, shape):
        return (scale * jax.random.normal(k, shape)).astype(jnp.float32)

    I, H = input_size, hidden_size
    p = {
        "wxr": w(ks[0], (I, H)), "whr": w(ks[1], (H, H)),
        "wxu": w(ks[2], (I, H)), "whu": w(ks[3], (H, H)),
        "wxn": w(ks[4], (I, H)), "whn": w(ks[5], (H, H)),
        "br": w(ks[6], (H,)), "bu": w(ks[7], (H,)), "bn": w(ks[8], (H,)),
    }
    if is_decoder:
        p["wsr"] = w(ks[9], (H, H))
        p["wsu"] = w(ks[10], (H, H))
        p["wsn"] = w(ks[11], (H, H))
    return p


if __name__ == "__main__":
    SEQ, BATCH, INPUT, HIDDEN = 8, 4, 16, 32

    key = jax.random.PRNGKey(0)
    kx, kh, ks, kp1, kp2 = jax.random.split(key, 5)

    x = jax.random.normal(kx, (SEQ, BATCH, INPUT), dtype=jnp.float32)
    h0 = jax.random.normal(kh, (BATCH, HIDDEN), dtype=jnp.float32)
    summary = jax.random.normal(ks, (BATCH, HIDDEN), dtype=jnp.float32)

    # ---- decoder, f32 compute ----
    dec_params = make_params(kp1, INPUT, HIDDEN, is_decoder=True)
    out, hf = gru_forward(x, h0, summary, dec_params, is_decoder=True,
                          compute_dtype=jnp.float32)
    out = jax.block_until_ready(out)
    hf = jax.block_until_ready(hf)
    r_out, r_hf = gru_reference(x, h0, summary, dec_params, is_decoder=True)
    assert jnp.allclose(out, r_out, atol=3e-2, rtol=3e-2), "decoder f32 outputs mismatch"
    assert jnp.allclose(hf, r_hf, atol=3e-2, rtol=3e-2), "decoder f32 hidden mismatch"

    # ---- decoder, bf16 weights / activations on the MXU (perf config) ----
    out_bf, hf_bf = gru_forward(x, h0, summary, dec_params, is_decoder=True,
                                compute_dtype=jnp.bfloat16)
    out_bf = jax.block_until_ready(out_bf)
    hf_bf = jax.block_until_ready(hf_bf)
    assert jnp.allclose(out_bf, r_out, atol=1e-1, rtol=1e-1), "decoder bf16 outputs mismatch"
    assert jnp.allclose(hf_bf, r_hf, atol=1e-1, rtol=1e-1), "decoder bf16 hidden mismatch"

    # ---- encoder (no summary path compiled at all), f32 compute ----
    enc_params = make_params(kp2, INPUT, HIDDEN, is_decoder=False)
    out_e, hf_e = gru_forward(x, h0, None, enc_params, is_decoder=False,
                              compute_dtype=jnp.float32)
    out_e = jax.block_until_ready(out_e)
    hf_e = jax.block_until_ready(hf_e)
    r_out_e, r_hf_e = gru_reference(x, h0, None, enc_params, is_decoder=False)
    assert jnp.allclose(out_e, r_out_e, atol=3e-2, rtol=3e-2), "encoder outputs mismatch"
    assert jnp.allclose(hf_e, r_hf_e, atol=3e-2, rtol=3e-2), "encoder hidden mismatch"

    print("KERNEL_OK")
</pallas_src>

<mosaic_0001>
module attributes {stable_mosaic.version = 11 : i64} {
  func.func @kernel(%arg0: i32, %arg1: i32, %arg2: memref<8x8x256xf32, #tpu.memory_space<vmem>>, %arg3: memref<8x8x128xf32, #tpu.memory_space<vmem>>, %arg4: memref<8x128xf32, #tpu.memory_space<vmem>>, %arg5: memref<8x128xf32, #tpu.memory_space<vmem>>, %arg6: memref<128x256xf32, #tpu.memory_space<vmem>>, %arg7: memref<256x128xf32, #tpu.memory_space<vmem>>, %arg8: memref<8x8x128xf32, #tpu.memory_space<vmem>>, %arg9: memref<8x128xf32, #tpu.memory_space<vmem>>, %arg10: memref<8x128xf32, #tpu.memory_space<vmem>>) attributes {dimension_semantics = [#tpu.dimension_semantics<parallel>, #tpu.dimension_semantics<arbitrary>], iteration_bounds = array<i64: 1, 1>, scalar_prefetch = 0 : i64, scratch_operands = 1 : i64, tpu.core_type = #tpu.core_type<tc>, window_params = [{transform_indices = @transform_0, window_bounds = array<i64: 8, 8, 256>}, {transform_indices = @transform_1, window_bounds = array<i64: 8, 8, 128>}, {transform_indices = @transform_2, window_bounds = array<i64: 8, 128>}, {transform_indices = @transform_3, window_bounds = array<i64: 8, 128>}, {pipeline_mode = #tpu.pipeline_mode<synchronous>, transform_indices = @transform_4, window_bounds = array<i64: 128, 256>}, {pipeline_mode = #tpu.pipeline_mode<synchronous>, transform_indices = @transform_5, window_bounds = array<i64: 256, 128>}, {transform_indices = @transform_6, window_bounds = array<i64: 8, 8, 128>}, {transform_indices = @transform_7, window_bounds = array<i64: 8, 128>}]} {
    %c0_i32 = arith.constant 0 : i32
    %0 = arith.cmpi eq, %arg1, %c0_i32 : i32
    %1 = arith.extui %0 : i1 to i32
    %c0_i32_0 = arith.constant 0 : i32
    %2 = arith.cmpi ne, %1, %c0_i32_0 : i32
    scf.if %2 {
      %c0_100 = arith.constant 0 : index
      %c0_101 = arith.constant 0 : index
      %291 = vector.load %arg4[%c0_100, %c0_101] : memref<8x128xf32, #tpu.memory_space<vmem>>, vector<8x128xf32>
      %c0_102 = arith.constant 0 : index
      %c0_103 = arith.constant 0 : index
      %292 = vector.load %arg10[%c0_102, %c0_103] : memref<8x128xf32, #tpu.memory_space<vmem>>, vector<8x128xf32>
      tpu.vector_store %arg10[%c0_102, %c0_103], %291 {strides = array<i32>} : memref<8x128xf32, #tpu.memory_space<vmem>>, vector<8x128xf32>,
    } else {
    }
    %c0 = arith.constant 0 : index
    %c0_1 = arith.constant 0 : index
    %3 = vector.load %arg6[%c0, %c0_1] : memref<128x256xf32, #tpu.memory_space<vmem>>, vector<128x256xf32>
    %c0_2 = arith.constant 0 : index
    %c0_3 = arith.constant 0 : index
    %4 = vector.load %arg7[%c0_2, %c0_3] : memref<256x128xf32, #tpu.memory_space<vmem>>, vector<256x128xf32>
    %c0_4 = arith.constant 0 : index
    %c0_5 = arith.constant 0 : index
    %5 = vector.load %arg5[%c0_4, %c0_5] : memref<8x128xf32, #tpu.memory_space<vmem>>, vector<8x128xf32>
    %c0_6 = arith.constant 0 : index
    %c0_7 = arith.constant 0 : index
    %6 = vector.load %arg10[%c0_6, %c0_7] : memref<8x128xf32, #tpu.memory_space<vmem>>, vector<8x128xf32>
    %c0_i32_8 = arith.constant 0 : i32
    %7 = arith.index_cast %c0_i32_8 : i32 to index
    %c0_9 = arith.constant 0 : index
    %c0_10 = arith.constant 0 : index
    %8 = vector.load %arg2[%7, %c0_9, %c0_10] : memref<8x8x256xf32, #tpu.memory_space<vmem>>, vector<1x8x256xf32>
    %9 = vector.shape_cast %8 : vector<1x8x256xf32> to vector<8x256xf32>
    %cst = arith.constant dense<0.000000e+00> : vector<8x256xf32>
    %10 = tpu.matmul %6, %3, %cst {dimension_numbers = #tpu.dot_dimension_numbers<[1], [0], [0], [1], [0, 0, 1, 1], [], []>} : vector<8x128xf32>, vector<128x256xf32>, vector<8x256xf32> -> vector<8x256xf32>
    %11 = arith.addf %9, %10 : vector<8x256xf32>
    %12 = vector.extract_strided_slice %11 {offsets = [0, 0], sizes = [8, 128], strides = [1, 1]} : vector<8x256xf32> to vector<8x128xf32>
    %13 = arith.negf %12 : vector<8x128xf32>
    %14 = math.exp %13 : vector<8x128xf32>
    %cst_11 = arith.constant 1.000000e+00 : f32
    %15 = vector.broadcast %cst_11 : f32 to vector<8x128xf32>
    %16 = arith.addf %15, %14 : vector<8x128xf32>
    %17 = arith.divf %15, %16 : vector<8x128xf32>
    %18 = vector.extract_strided_slice %11 {offsets = [0, 128], sizes = [8, 128], strides = [1, 1]} : vector<8x256xf32> to vector<8x128xf32>
    %19 = arith.negf %18 : vector<8x128xf32>
    %20 = math.exp %19 : vector<8x128xf32>
    %cst_12 = arith.constant 1.000000e+00 : f32
    %21 = vector.broadcast %cst_12 : f32 to vector<8x128xf32>
    %22 = arith.addf %21, %20 : vector<8x128xf32>
    %23 = arith.divf %21, %22 : vector<8x128xf32>
    %24 = arith.mulf %17, %6 : vector<8x128xf32>
    %25 = arith.mulf %17, %5 : vector<8x128xf32>
    %26 = tpu.concatenate %24, %25 in 1 : vector<8x128xf32>, vector<8x128xf32> -> vector<8x256xf32>
    %27 = arith.index_cast %c0_i32_8 : i32 to index
    %c0_13 = arith.constant 0 : index
    %c0_14 = arith.constant 0 : index
    %28 = vector.load %arg3[%27, %c0_13, %c0_14] : memref<8x8x128xf32, #tpu.memory_space<vmem>>, vector<1x8x128xf32>
    %29 = vector.shape_cast %28 : vector<1x8x128xf32> to vector<8x128xf32>
    %cst_15 = arith.constant dense<0.000000e+00> : vector<8x128xf32>
    %30 = tpu.matmul %26, %4, %cst_15 {dimension_numbers = #tpu.dot_dimension_numbers<[1], [0], [0], [1], [0, 0, 1, 1], [], []>} : vector<8x256xf32>, vector<256x128xf32>, vector<8x128xf32> -> vector<8x128xf32>
    %31 = arith.addf %29, %30 : vector<8x128xf32>
    %32 = math.tanh %31 : vector<8x128xf32>
    %33 = arith.mulf %23, %6 : vector<8x128xf32>
    %cst_16 = arith.constant 1.000000e+00 : f32
    %34 = vector.broadcast %cst_16 : f32 to vector<8x128xf32>
    %35 = arith.subf %34, %23 : vector<8x128xf32>
    %36 = arith.mulf %35, %32 : vector<8x128xf32>
    %37 = arith.addf %33, %36 : vector<8x128xf32>
    %38 = arith.index_cast %c0_i32_8 : i32 to index
    %c0_17 = arith.constant 0 : index
    %c0_18 = arith.constant 0 : index
    %39 = vector.load %arg8[%38, %c0_17, %c0_18] : memref<8x8x128xf32, #tpu.memory_space<vmem>>, vector<1x8x128xf32>
    %40 = vector.shape_cast %39 : vector<1x8x128xf32> to vector<8x128xf32>
    %41 = vector.shape_cast %37 : vector<8x128xf32> to vector<1x8x128xf32>
    tpu.vector_store %arg8[%38, %c0_17, %c0_18], %41 {strides = array<i32>} : memref<8x8x128xf32, #tpu.memory_space<vmem>>, vector<1x8x128xf32>,
    %c1_i32 = arith.constant 1 : i32
    %42 = arith.index_cast %c1_i32 : i32 to index
    %c0_19 = arith.constant 0 : index
    %c0_20 = arith.constant 0 : index
    %43 = vector.load %arg2[%42, %c0_19, %c0_20] : memref<8x8x256xf32, #tpu.memory_space<vmem>>, vector<1x8x256xf32>
    %44 = vector.shape_cast %43 : vector<1x8x256xf32> to vector<8x256xf32>
    %cst_21 = arith.constant dense<0.000000e+00> : vector<8x256xf32>
    %45 = tpu.matmul %37, %3, %cst_21 {dimension_numbers = #tpu.dot_dimension_numbers<[1], [0], [0], [1], [0, 0, 1, 1], [], []>} : vector<8x128xf32>, vector<128x256xf32>, vector<8x256xf32> -> vector<8x256xf32>
    %46 = arith.addf %44, %45 : vector<8x256xf32>
    %47 = vector.extract_strided_slice %46 {offsets = [0, 0], sizes = [8, 128], strides = [1, 1]} : vector<8x256xf32> to vector<8x128xf32>
    %48 = arith.negf %47 : vector<8x128xf32>
    %49 = math.exp %48 : vector<8x128xf32>
    %cst_22 = arith.constant 1.000000e+00 : f32
    %50 = vector.broadcast %cst_22 : f32 to vector<8x128xf32>
    %51 = arith.addf %50, %49 : vector<8x128xf32>
    %52 = arith.divf %50, %51 : vector<8x128xf32>
    %53 = vector.extract_strided_slice %46 {offsets = [0, 128], sizes = [8, 128], strides = [1, 1]} : vector<8x256xf32> to vector<8x128xf32>
    %54 = arith.negf %53 : vector<8x128xf32>
    %55 = math.exp %54 : vector<8x128xf32>
    %cst_23 = arith.constant 1.000000e+00 : f32
    %56 = vector.broadcast %cst_23 : f32 to vector<8x128xf32>
    %57 = arith.addf %56, %55 : vector<8x128xf32>
    %58 = arith.divf %56, %57 : vector<8x128xf32>
    %59 = arith.mulf %52, %37 : vector<8x128xf32>
    %60 = arith.mulf %52, %5 : vector<8x128xf32>
    %61 = tpu.concatenate %59, %60 in 1 : vector<8x128xf32>, vector<8x128xf32> -> vector<8x256xf32>
    %62 = arith.index_cast %c1_i32 : i32 to index
    %c0_24 = arith.constant 0 : index
    %c0_25 = arith.constant 0 : index
    %63 = vector.load %arg3[%62, %c0_24, %c0_25] : memref<8x8x128xf32, #tpu.memory_space<vmem>>, vector<1x8x128xf32>
    %64 = vector.shape_cast %63 : vector<1x8x128xf32> to vector<8x128xf32>
    %cst_26 = arith.constant dense<0.000000e+00> : vector<8x128xf32>
    %65 = tpu.matmul %61, %4, %cst_26 {dimension_numbers = #tpu.dot_dimension_numbers<[1], [0], [0], [1], [0, 0, 1, 1], [], []>} : vector<8x256xf32>, vector<256x128xf32>, vector<8x128xf32> -> vector<8x128xf32>
    %66 = arith.addf %64, %65 : vector<8x128xf32>
    %67 = math.tanh %66 : vector<8x128xf32>
    %68 = arith.mulf %58, %37 : vector<8x128xf32>
    %cst_27 = arith.constant 1.000000e+00 : f32
    %69 = vector.broadcast %cst_27 : f32 to vector<8x128xf32>
    %70 = arith.subf %69, %58 : vector<8x128xf32>
    %71 = arith.mulf %70, %67 : vector<8x128xf32>
    %72 = arith.addf %68, %71 : vector<8x128xf32>
    %73 = arith.index_cast %c1_i32 : i32 to index
    %c0_28 = arith.constant 0 : index
    %c0_29 = arith.constant 0 : index
    %74 = vector.load %arg8[%73, %c0_28, %c0_29] : memref<8x8x128xf32, #tpu.memory_space<vmem>>, vector<1x8x128xf32>
    %75 = vector.shape_cast %74 : vector<1x8x128xf32> to vector<8x128xf32>
    %76 = vector.shape_cast %72 : vector<8x128xf32> to vector<1x8x128xf32>
    tpu.vector_store %arg8[%73, %c0_28, %c0_29], %76 {strides = array<i32>} : memref<8x8x128xf32, #tpu.memory_space<vmem>>, vector<1x8x128xf32>,
    %c2_i32 = arith.constant 2 : i32
    %77 = arith.index_cast %c2_i32 : i32 to index
    %c0_30 = arith.constant 0 : index
    %c0_31 = arith.constant 0 : index
    %78 = vector.load %arg2[%77, %c0_30, %c0_31] : memref<8x8x256xf32, #tpu.memory_space<vmem>>, vector<1x8x256xf32>
    %79 = vector.shape_cast %78 : vector<1x8x256xf32> to vector<8x256xf32>
    %cst_32 = arith.constant dense<0.000000e+00> : vector<8x256xf32>
    %80 = tpu.matmul %72, %3, %cst_32 {dimension_numbers = #tpu.dot_dimension_numbers<[1], [0], [0], [1], [0, 0, 1, 1], [], []>} : vector<8x128xf32>, vector<128x256xf32>, vector<8x256xf32> -> vector<8x256xf32>
    %81 = arith.addf %79, %80 : vector<8x256xf32>
    %82 = vector.extract_strided_slice %81 {offsets = [0, 0], sizes = [8, 128], strides = [1, 1]} : vector<8x256xf32> to vector<8x128xf32>
    %83 = arith.negf %82 : vector<8x128xf32>
    %84 = math.exp %83 : vector<8x128xf32>
    %cst_33 = arith.constant 1.000000e+00 : f32
    %85 = vector.broadcast %cst_33 : f32 to vector<8x128xf32>
    %86 = arith.addf %85, %84 : vector<8x128xf32>
    %87 = arith.divf %85, %86 : vector<8x128xf32>
    %88 = vector.extract_strided_slice %81 {offsets = [0, 128], sizes = [8, 128], strides = [1, 1]} : vector<8x256xf32> to vector<8x128xf32>
    %89 = arith.negf %88 : vector<8x128xf32>
    %90 = math.exp %89 : vector<8x128xf32>
    %cst_34 = arith.constant 1.000000e+00 : f32
    %91 = vector.broadcast %cst_34 : f32 to vector<8x128xf32>
    %92 = arith.addf %91, %90 : vector<8x128xf32>
    %93 = arith.divf %91, %92 : vector<8x128xf32>
    %94 = arith.mulf %87, %72 : vector<8x128xf32>
    %95 = arith.mulf %87, %5 : vector<8x128xf32>
    %96 = tpu.concatenate %94, %95 in 1 : vector<8x128xf32>, vector<8x128xf32> -> vector<8x256xf32>
    %97 = arith.index_cast %c2_i32 : i32 to index
    %c0_35 = arith.constant 0 : index
    %c0_36 = arith.constant 0 : index
    %98 = vector.load %arg3[%97, %c0_35, %c0_36] : memref<8x8x128xf32, #tpu.memory_space<vmem>>, vector<1x8x128xf32>
    %99 = vector.shape_cast %98 : vector<1x8x128xf32> to vector<8x128xf32>
    %cst_37 = arith.constant dense<0.000000e+00> : vector<8x128xf32>
    %100 = tpu.matmul %96, %4, %cst_37 {dimension_numbers = #tpu.dot_dimension_numbers<[1], [0], [0], [1], [0, 0, 1, 1], [], []>} : vector<8x256xf32>, vector<256x128xf32>, vector<8x128xf32> -> vector<8x128xf32>
    %101 = arith.addf %99, %100 : vector<8x128xf32>
    %102 = math.tanh %101 : vector<8x128xf32>
    %103 = arith.mulf %93, %72 : vector<8x128xf32>
    %cst_38 = arith.constant 1.000000e+00 : f32
    %104 = vector.broadcast %cst_38 : f32 to vector<8x128xf32>
    %105 = arith.subf %104, %93 : vector<8x128xf32>
    %106 = arith.mulf %105, %102 : vector<8x128xf32>
    %107 = arith.addf %103, %106 : vector<8x128xf32>
    %108 = arith.index_cast %c2_i32 : i32 to index
    %c0_39 = arith.constant 0 : index
    %c0_40 = arith.constant 0 : index
    %109 = vector.load %arg8[%108, %c0_39, %c0_40] : memref<8x8x128xf32, #tpu.memory_space<vmem>>, vector<1x8x128xf32>
    %110 = vector.shape_cast %109 : vector<1x8x128xf32> to vector<8x128xf32>
    %111 = vector.shape_cast %107 : vector<8x128xf32> to vector<1x8x128xf32>
    tpu.vector_store %arg8[%108, %c0_39, %c0_40], %111 {strides = array<i32>} : memref<8x8x128xf32, #tpu.memory_space<vmem>>, vector<1x8x128xf32>,
    %c3_i32 = arith.constant 3 : i32
    %112 = arith.index_cast %c3_i32 : i32 to index
    %c0_41 = arith.constant 0 : index
    %c0_42 = arith.constant 0 : index
    %113 = vector.load %arg2[%112, %c0_41, %c0_42] : memref<8x8x256xf32, #tpu.memory_space<vmem>>, vector<1x8x256xf32>
    %114 = vector.shape_cast %113 : vector<1x8x256xf32> to vector<8x256xf32>
    %cst_43 = arith.constant dense<0.000000e+00> : vector<8x256xf32>
    %115 = tpu.matmul %107, %3, %cst_43 {dimension_numbers = #tpu.dot_dimension_numbers<[1], [0], [0], [1], [0, 0, 1, 1], [], []>} : vector<8x128xf32>, vector<128x256xf32>, vector<8x256xf32> -> vector<8x256xf32>
    %116 = arith.addf %114, %115 : vector<8x256xf32>
    %117 = vector.extract_strided_slice %116 {offsets = [0, 0], sizes = [8, 128], strides = [1, 1]} : vector<8x256xf32> to vector<8x128xf32>
    %118 = arith.negf %117 : vector<8x128xf32>
    %119 = math.exp %118 : vector<8x128xf32>
    %cst_44 = arith.constant 1.000000e+00 : f32
    %120 = vector.broadcast %cst_44 : f32 to vector<8x128xf32>
    %121 = arith.addf %120, %119 : vector<8x128xf32>
    %122 = arith.divf %120, %121 : vector<8x128xf32>
    %123 = vector.extract_strided_slice %116 {offsets = [0, 128], sizes = [8, 128], strides = [1, 1]} : vector<8x256xf32> to vector<8x128xf32>
    %124 = arith.negf %123 : vector<8x128xf32>
    %125 = math.exp %124 : vector<8x128xf32>
    %cst_45 = arith.constant 1.000000e+00 : f32
    %126 = vector.broadcast %cst_45 : f32 to vector<8x128xf32>
    %127 = arith.addf %126, %125 : vector<8x128xf32>
    %128 = arith.divf %126, %127 : vector<8x128xf32>
    %129 = arith.mulf %122, %107 : vector<8x128xf32>
    %130 = arith.mulf %122, %5 : vector<8x128xf32>
    %131 = tpu.concatenate %129, %130 in 1 : vector<8x128xf32>, vector<8x128xf32> -> vector<8x256xf32>
    %132 = arith.index_cast %c3_i32 : i32 to index
    %c0_46 = arith.constant 0 : index
    %c0_47 = arith.constant 0 : index
    %133 = vector.load %arg3[%132, %c0_46, %c0_47] : memref<8x8x128xf32, #tpu.memory_space<vmem>>, vector<1x8x128xf32>
    %134 = vector.shape_cast %133 : vector<1x8x128xf32> to vector<8x128xf32>
    %cst_48 = arith.constant dense<0.000000e+00> : vector<8x128xf32>
    %135 = tpu.matmul %131, %4, %cst_48 {dimension_numbers = #tpu.dot_dimension_numbers<[1], [0], [0], [1], [0, 0, 1, 1], [], []>} : vector<8x256xf32>, vector<256x128xf32>, vector<8x128xf32> -> vector<8x128xf32>
    %136 = arith.addf %134, %135 : vector<8x128xf32>
    %137 = math.tanh %136 : vector<8x128xf32>
    %138 = arith.mulf %128, %107 : vector<8x128xf32>
    %cst_49 = arith.constant 1.000000e+00 : f32
    %139 = vector.broadcast %cst_49 : f32 to vector<8x128xf32>
    %140 = arith.subf %139, %128 : vector<8x128xf32>
    %141 = arith.mulf %140, %137 : vector<8x128xf32>
    %142 = arith.addf %138, %141 : vector<8x128xf32>
    %143 = arith.index_cast %c3_i32 : i32 to index
    %c0_50 = arith.constant 0 : index
    %c0_51 = arith.constant 0 : index
    %144 = vector.load %arg8[%143, %c0_50, %c0_51] : memref<8x8x128xf32, #tpu.memory_space<vmem>>, vector<1x8x128xf32>
    %145 = vector.shape_cast %144 : vector<1x8x128xf32> to vector<8x128xf32>
    %146 = vector.shape_cast %142 : vector<8x128xf32> to vector<1x8x128xf32>
    tpu.vector_store %arg8[%143, %c0_50, %c0_51], %146 {strides = array<i32>} : memref<8x8x128xf32, #tpu.memory_space<vmem>>, vector<1x8x128xf32>,
    %c4_i32 = arith.constant 4 : i32
    %147 = arith.index_cast %c4_i32 : i32 to index
    %c0_52 = arith.constant 0 : index
    %c0_53 = arith.constant 0 : index
    %148 = vector.load %arg2[%147, %c0_52, %c0_53] : memref<8x8x256xf32, #tpu.memory_space<vmem>>, vector<1x8x256xf32>
    %149 = vector.shape_cast %148 : vector<1x8x256xf32> to vector<8x256xf32>
    %cst_54 = arith.constant dense<0.000000e+00> : vector<8x256xf32>
    %150 = tpu.matmul %142, %3, %cst_54 {dimension_numbers = #tpu.dot_dimension_numbers<[1], [0], [0], [1], [0, 0, 1, 1], [], []>} : vector<8x128xf32>, vector<128x256xf32>, vector<8x256xf32> -> vector<8x256xf32>
    %151 = arith.addf %149, %150 : vector<8x256xf32>
    %152 = vector.extract_strided_slice %151 {offsets = [0, 0], sizes = [8, 128], strides = [1, 1]} : vector<8x256xf32> to vector<8x128xf32>
    %153 = arith.negf %152 : vector<8x128xf32>
    %154 = math.exp %153 : vector<8x128xf32>
    %cst_55 = arith.constant 1.000000e+00 : f32
    %155 = vector.broadcast %cst_55 : f32 to vector<8x128xf32>
    %156 = arith.addf %155, %154 : vector<8x128xf32>
    %157 = arith.divf %155, %156 : vector<8x128xf32>
    %158 = vector.extract_strided_slice %151 {offsets = [0, 128], sizes = [8, 128], strides = [1, 1]} : vector<8x256xf32> to vector<8x128xf32>
    %159 = arith.negf %158 : vector<8x128xf32>
    %160 = math.exp %159 : vector<8x128xf32>
    %cst_56 = arith.constant 1.000000e+00 : f32
    %161 = vector.broadcast %cst_56 : f32 to vector<8x128xf32>
    %162 = arith.addf %161, %160 : vector<8x128xf32>
    %163 = arith.divf %161, %162 : vector<8x128xf32>
    %164 = arith.mulf %157, %142 : vector<8x128xf32>
    %165 = arith.mulf %157, %5 : vector<8x128xf32>
    %166 = tpu.concatenate %164, %165 in 1 : vector<8x128xf32>, vector<8x128xf32> -> vector<8x256xf32>
    %167 = arith.index_cast %c4_i32 : i32 to index
    %c0_57 = arith.constant 0 : index
    %c0_58 = arith.constant 0 : index
    %168 = vector.load %arg3[%167, %c0_57, %c0_58] : memref<8x8x128xf32, #tpu.memory_space<vmem>>, vector<1x8x128xf32>
    %169 = vector.shape_cast %168 : vector<1x8x128xf32> to vector<8x128xf32>
    %cst_59 = arith.constant dense<0.000000e+00> : vector<8x128xf32>
    %170 = tpu.matmul %166, %4, %cst_59 {dimension_numbers = #tpu.dot_dimension_numbers<[1], [0], [0], [1], [0, 0, 1, 1], [], []>} : vector<8x256xf32>, vector<256x128xf32>, vector<8x128xf32> -> vector<8x128xf32>
    %171 = arith.addf %169, %170 : vector<8x128xf32>
    %172 = math.tanh %171 : vector<8x128xf32>
    %173 = arith.mulf %163, %142 : vector<8x128xf32>
    %cst_60 = arith.constant 1.000000e+00 : f32
    %174 = vector.broadcast %cst_60 : f32 to vector<8x128xf32>
    %175 = arith.subf %174, %163 : vector<8x128xf32>
    %176 = arith.mulf %175, %172 : vector<8x128xf32>
    %177 = arith.addf %173, %176 : vector<8x128xf32>
    %178 = arith.index_cast %c4_i32 : i32 to index
    %c0_61 = arith.constant 0 : index
    %c0_62 = arith.constant 0 : index
    %179 = vector.load %arg8[%178, %c0_61, %c0_62] : memref<8x8x128xf32, #tpu.memory_space<vmem>>, vector<1x8x128xf32>
    %180 = vector.shape_cast %179 : vector<1x8x128xf32> to vector<8x128xf32>
    %181 = vector.shape_cast %177 : vector<8x128xf32> to vector<1x8x128xf32>
    tpu.vector_store %arg8[%178, %c0_61, %c0_62], %181 {strides = array<i32>} : memref<8x8x128xf32, #tpu.memory_space<vmem>>, vector<1x8x128xf32>,
    %c5_i32 = arith.constant 5 : i32
    %182 = arith.index_cast %c5_i32 : i32 to index
    %c0_63 = arith.constant 0 : index
    %c0_64 = arith.constant 0 : index
    %183 = vector.load %arg2[%182, %c0_63, %c0_64] : memref<8x8x256xf32, #tpu.memory_space<vmem>>, vector<1x8x256xf32>
    %184 = vector.shape_cast %183 : vector<1x8x256xf32> to vector<8x256xf32>
    %cst_65 = arith.constant dense<0.000000e+00> : vector<8x256xf32>
    %185 = tpu.matmul %177, %3, %cst_65 {dimension_numbers = #tpu.dot_dimension_numbers<[1], [0], [0], [1], [0, 0, 1, 1], [], []>} : vector<8x128xf32>, vector<128x256xf32>, vector<8x256xf32> -> vector<8x256xf32>
    %186 = arith.addf %184, %185 : vector<8x256xf32>
    %187 = vector.extract_strided_slice %186 {offsets = [0, 0], sizes = [8, 128], strides = [1, 1]} : vector<8x256xf32> to vector<8x128xf32>
    %188 = arith.negf %187 : vector<8x128xf32>
    %189 = math.exp %188 : vector<8x128xf32>
    %cst_66 = arith.constant 1.000000e+00 : f32
    %190 = vector.broadcast %cst_66 : f32 to vector<8x128xf32>
    %191 = arith.addf %190, %189 : vector<8x128xf32>
    %192 = arith.divf %190, %191 : vector<8x128xf32>
    %193 = vector.extract_strided_slice %186 {offsets = [0, 128], sizes = [8, 128], strides = [1, 1]} : vector<8x256xf32> to vector<8x128xf32>
    %194 = arith.negf %193 : vector<8x128xf32>
    %195 = math.exp %194 : vector<8x128xf32>
    %cst_67 = arith.constant 1.000000e+00 : f32
    %196 = vector.broadcast %cst_67 : f32 to vector<8x128xf32>
    %197 = arith.addf %196, %195 : vector<8x128xf32>
    %198 = arith.divf %196, %197 : vector<8x128xf32>
    %199 = arith.mulf %192, %177 : vector<8x128xf32>
    %200 = arith.mulf %192, %5 : vector<8x128xf32>
    %201 = tpu.concatenate %199, %200 in 1 : vector<8x128xf32>, vector<8x128xf32> -> vector<8x256xf32>
    %202 = arith.index_cast %c5_i32 : i32 to index
    %c0_68 = arith.constant 0 : index
    %c0_69 = arith.constant 0 : index
    %203 = vector.load %arg3[%202, %c0_68, %c0_69] : memref<8x8x128xf32, #tpu.memory_space<vmem>>, vector<1x8x128xf32>
    %204 = vector.shape_cast %203 : vector<1x8x128xf32> to vector<8x128xf32>
    %cst_70 = arith.constant dense<0.000000e+00> : vector<8x128xf32>
    %205 = tpu.matmul %201, %4, %cst_70 {dimension_numbers = #tpu.dot_dimension_numbers<[1], [0], [0], [1], [0, 0, 1, 1], [], []>} : vector<8x256xf32>, vector<256x128xf32>, vector<8x128xf32> -> vector<8x128xf32>
    %206 = arith.addf %204, %205 : vector<8x128xf32>
    %207 = math.tanh %206 : vector<8x128xf32>
    %208 = arith.mulf %198, %177 : vector<8x128xf32>
    %cst_71 = arith.constant 1.000000e+00 : f32
    %209 = vector.broadcast %cst_71 : f32 to vector<8x128xf32>
    %210 = arith.subf %209, %198 : vector<8x128xf32>
    %211 = arith.mulf %210, %207 : vector<8x128xf32>
    %212 = arith.addf %208, %211 : vector<8x128xf32>
    %213 = arith.index_cast %c5_i32 : i32 to index
    %c0_72 = arith.constant 0 : index
    %c0_73 = arith.constant 0 : index
    %214 = vector.load %arg8[%213, %c0_72, %c0_73] : memref<8x8x128xf32, #tpu.memory_space<vmem>>, vector<1x8x128xf32>
    %215 = vector.shape_cast %214 : vector<1x8x128xf32> to vector<8x128xf32>
    %216 = vector.shape_cast %212 : vector<8x128xf32> to vector<1x8x128xf32>
    tpu.vector_store %arg8[%213, %c0_72, %c0_73], %216 {strides = array<i32>} : memref<8x8x128xf32, #tpu.memory_space<vmem>>, vector<1x8x128xf32>,
    %c6_i32 = arith.constant 6 : i32
    %217 = arith.index_cast %c6_i32 : i32 to index
    %c0_74 = arith.constant 0 : index
    %c0_75 = arith.constant 0 : index
    %218 = vector.load %arg2[%217, %c0_74, %c0_75] : memref<8x8x256xf32, #tpu.memory_space<vmem>>, vector<1x8x256xf32>
    %219 = vector.shape_cast %218 : vector<1x8x256xf32> to vector<8x256xf32>
    %cst_76 = arith.constant dense<0.000000e+00> : vector<8x256xf32>
    %220 = tpu.matmul %212, %3, %cst_76 {dimension_numbers = #tpu.dot_dimension_numbers<[1], [0], [0], [1], [0, 0, 1, 1], [], []>} : vector<8x128xf32>, vector<128x256xf32>, vector<8x256xf32> -> vector<8x256xf32>
    %221 = arith.addf %219, %220 : vector<8x256xf32>
    %222 = vector.extract_strided_slice %221 {offsets = [0, 0], sizes = [8, 128], strides = [1, 1]} : vector<8x256xf32> to vector<8x128xf32>
    %223 = arith.negf %222 : vector<8x128xf32>
    %224 = math.exp %223 : vector<8x128xf32>
    %cst_77 = arith.constant 1.000000e+00 : f32
    %225 = vector.broadcast %cst_77 : f32 to vector<8x128xf32>
    %226 = arith.addf %225, %224 : vector<8x128xf32>
    %227 = arith.divf %225, %226 : vector<8x128xf32>
    %228 = vector.extract_strided_slice %221 {offsets = [0, 128], sizes = [8, 128], strides = [1, 1]} : vector<8x256xf32> to vector<8x128xf32>
    %229 = arith.negf %228 : vector<8x128xf32>
    %230 = math.exp %229 : vector<8x128xf32>
    %cst_78 = arith.constant 1.000000e+00 : f32
    %231 = vector.broadcast %cst_78 : f32 to vector<8x128xf32>
    %232 = arith.addf %231, %230 : vector<8x128xf32>
    %233 = arith.divf %231, %232 : vector<8x128xf32>
    %234 = arith.mulf %227, %212 : vector<8x128xf32>
    %235 = arith.mulf %227, %5 : vector<8x128xf32>
    %236 = tpu.concatenate %234, %235 in 1 : vector<8x128xf32>, vector<8x128xf32> -> vector<8x256xf32>
    %237 = arith.index_cast %c6_i32 : i32 to index
    %c0_79 = arith.constant 0 : index
    %c0_80 = arith.constant 0 : index
    %238 = vector.load %arg3[%237, %c0_79, %c0_80] : memref<8x8x128xf32, #tpu.memory_space<vmem>>, vector<1x8x128xf32>
    %239 = vector.shape_cast %238 : vector<1x8x128xf32> to vector<8x128xf32>
    %cst_81 = arith.constant dense<0.000000e+00> : vector<8x128xf32>
    %240 = tpu.matmul %236, %4, %cst_81 {dimension_numbers = #tpu.dot_dimension_numbers<[1], [0], [0], [1], [0, 0, 1, 1], [], []>} : vector<8x256xf32>, vector<256x128xf32>, vector<8x128xf32> -> vector<8x128xf32>
    %241 = arith.addf %239, %240 : vector<8x128xf32>
    %242 = math.tanh %241 : vector<8x128xf32>
    %243 = arith.mulf %233, %212 : vector<8x128xf32>
    %cst_82 = arith.constant 1.000000e+00 : f32
    %244 = vector.broadcast %cst_82 : f32 to vector<8x128xf32>
    %245 = arith.subf %244, %233 : vector<8x128xf32>
    %246 = arith.mulf %245, %242 : vector<8x128xf32>
    %247 = arith.addf %243, %246 : vector<8x128xf32>
    %248 = arith.index_cast %c6_i32 : i32 to index
    %c0_83 = arith.constant 0 : index
    %c0_84 = arith.constant 0 : index
    %249 = vector.load %arg8[%248, %c0_83, %c0_84] : memref<8x8x128xf32, #tpu.memory_space<vmem>>, vector<1x8x128xf32>
    %250 = vector.shape_cast %249 : vector<1x8x128xf32> to vector<8x128xf32>
    %251 = vector.shape_cast %247 : vector<8x128xf32> to vector<1x8x128xf32>
    tpu.vector_store %arg8[%248, %c0_83, %c0_84], %251 {strides = array<i32>} : memref<8x8x128xf32, #tpu.memory_space<vmem>>, vector<1x8x128xf32>,
    %c7_i32 = arith.constant 7 : i32
    %252 = arith.index_cast %c7_i32 : i32 to index
    %c0_85 = arith.constant 0 : index
    %c0_86 = arith.constant 0 : index
    %253 = vector.load %arg2[%252, %c0_85, %c0_86] : memref<8x8x256xf32, #tpu.memory_space<vmem>>, vector<1x8x256xf32>
    %254 = vector.shape_cast %253 : vector<1x8x256xf32> to vector<8x256xf32>
    %cst_87 = arith.constant dense<0.000000e+00> : vector<8x256xf32>
    %255 = tpu.matmul %247, %3, %cst_87 {dimension_numbers = #tpu.dot_dimension_numbers<[1], [0], [0], [1], [0, 0, 1, 1], [], []>} : vector<8x128xf32>, vector<128x256xf32>, vector<8x256xf32> -> vector<8x256xf32>
    %256 = arith.addf %254, %255 : vector<8x256xf32>
    %257 = vector.extract_strided_slice %256 {offsets = [0, 0], sizes = [8, 128], strides = [1, 1]} : vector<8x256xf32> to vector<8x128xf32>
    %258 = arith.negf %257 : vector<8x128xf32>
    %259 = math.exp %258 : vector<8x128xf32>
    %cst_88 = arith.constant 1.000000e+00 : f32
    %260 = vector.broadcast %cst_88 : f32 to vector<8x128xf32>
    %261 = arith.addf %260, %259 : vector<8x128xf32>
    %262 = arith.divf %260, %261 : vector<8x128xf32>
    %263 = vector.extract_strided_slice %256 {offsets = [0, 128], sizes = [8, 128], strides = [1, 1]} : vector<8x256xf32> to vector<8x128xf32>
    %264 = arith.negf %263 : vector<8x128xf32>
    %265 = math.exp %264 : vector<8x128xf32>
    %cst_89 = arith.constant 1.000000e+00 : f32
    %266 = vector.broadcast %cst_89 : f32 to vector<8x128xf32>
    %267 = arith.addf %266, %265 : vector<8x128xf32>
    %268 = arith.divf %266, %267 : vector<8x128xf32>
    %269 = arith.mulf %262, %247 : vector<8x128xf32>
    %270 = arith.mulf %262, %5 : vector<8x128xf32>
    %271 = tpu.concatenate %269, %270 in 1 : vector<8x128xf32>, vector<8x128xf32> -> vector<8x256xf32>
    %272 = arith.index_cast %c7_i32 : i32 to index
    %c0_90 = arith.constant 0 : index
    %c0_91 = arith.constant 0 : index
    %273 = vector.load %arg3[%272, %c0_90, %c0_91] : memref<8x8x128xf32, #tpu.memory_space<vmem>>, vector<1x8x128xf32>
    %274 = vector.shape_cast %273 : vector<1x8x128xf32> to vector<8x128xf32>
    %cst_92 = arith.constant dense<0.000000e+00> : vector<8x128xf32>
    %275 = tpu.matmul %271, %4, %cst_92 {dimension_numbers = #tpu.dot_dimension_numbers<[1], [0], [0], [1], [0, 0, 1, 1], [], []>} : vector<8x256xf32>, vector<256x128xf32>, vector<8x128xf32> -> vector<8x128xf32>
    %276 = arith.addf %274, %275 : vector<8x128xf32>
    %277 = math.tanh %276 : vector<8x128xf32>
    %278 = arith.mulf %268, %247 : vector<8x128xf32>
    %cst_93 = arith.constant 1.000000e+00 : f32
    %279 = vector.broadcast %cst_93 : f32 to vector<8x128xf32>
    %280 = arith.subf %279, %268 : vector<8x128xf32>
    %281 = arith.mulf %280, %277 : vector<8x128xf32>
    %282 = arith.addf %278, %281 : vector<8x128xf32>
    %283 = arith.index_cast %c7_i32 : i32 to index
    %c0_94 = arith.constant 0 : index
    %c0_95 = arith.constant 0 : index
    %284 = vector.load %arg8[%283, %c0_94, %c0_95] : memref<8x8x128xf32, #tpu.memory_space<vmem>>, vector<1x8x128xf32>
    %285 = vector.shape_cast %284 : vector<1x8x128xf32> to vector<8x128xf32>
    %286 = vector.shape_cast %282 : vector<8x128xf32> to vector<1x8x128xf32>
    tpu.vector_store %arg8[%283, %c0_94, %c0_95], %286 {strides = array<i32>} : memref<8x8x128xf32, #tpu.memory_space<vmem>>, vector<1x8x128xf32>,
    %c8_i32 = arith.constant 8 : i32
    %c0_96 = arith.constant 0 : index
    %c0_97 = arith.constant 0 : index
    %287 = vector.load %arg10[%c0_96, %c0_97] : memref<8x128xf32, #tpu.memory_space<vmem>>, vector<8x128xf32>
    tpu.vector_store %arg10[%c0_96, %c0_97], %282 {strides = array<i32>} : memref<8x128xf32, #tpu.memory_space<vmem>>, vector<8x128xf32>,
    %c0_i32_98 = arith.constant 0 : i32
    %288 = arith.cmpi eq, %arg1, %c0_i32_98 : i32
    %289 = arith.extui %288 : i1 to i32
    %c0_i32_99 = arith.constant 0 : i32
    %290 = arith.cmpi ne, %289, %c0_i32_99 : i32
    scf.if %290 {
      %c0_100 = arith.constant 0 : index
      %c0_101 = arith.constant 0 : index
      %291 = vector.load %arg9[%c0_100, %c0_101] : memref<8x128xf32, #tpu.memory_space<vmem>>, vector<8x128xf32>
      tpu.vector_store %arg9[%c0_100, %c0_101], %282 {strides = array<i32>} : memref<8x128xf32, #tpu.memory_space<vmem>>, vector<8x128xf32>,
    } else {
    }
    return
  }
  func.func @transform_0(%arg0: i32, %arg1: i32) -> (i32, i32, i32) {
    %c0_i32 = arith.constant 0 : i32
    %c0_i32_0 = arith.constant 0 : i32
    return %arg1, %arg0, %c0_i32 : i32, i32, i32
  }
  func.func @transform_1(%arg0: i32, %arg1: i32) -> (i32, i32, i32) {
    %c0_i32 = arith.constant 0 : i32
    %c0_i32_0 = arith.constant 0 : i32
    return %arg1, %arg0, %c0_i32 : i32, i32, i32
  }
  func.func @transform_2(%arg0: i32, %arg1: i32) -> (i32, i32) {
    %c0_i32 = arith.constant 0 : i32
    %c0_i32_0 = arith.constant 0 : i32
    return %arg0, %c0_i32 : i32, i32
  }
  func.func @transform_3(%arg0: i32, %arg1: i32) -> (i32, i32) {
    %c0_i32 = arith.constant 0 : i32
    %c0_i32_0 = arith.constant 0 : i32
    return %arg0, %c0_i32 : i32, i32
  }
  func.func @transform_4(%arg0: i32, %arg1: i32) -> (i32, i32) {
    %c0_i32 = arith.constant 0 : i32
    %c0_i32_0 = arith.constant 0 : i32
    %c0_i32_1 = arith.constant 0 : i32
    return %c0_i32, %c0_i32_0 : i32, i32
  }
  func.func @transform_5(%arg0: i32, %arg1: i32) -> (i32, i32) {
    %c0_i32 = arith.constant 0 : i32
    %c0_i32_0 = arith.constant 0 : i32
    %c0_i32_1 = arith.constant 0 : i32
    return %c0_i32, %c0_i32_0 : i32, i32
  }
  func.func @transform_6(%arg0: i32, %arg1: i32) -> (i32, i32, i32) {
    %c0_i32 = arith.constant 0 : i32
    %c0_i32_0 = arith.constant 0 : i32
    return %arg1, %arg0, %c0_i32 : i32, i32, i32
  }
  func.func @transform_7(%arg0: i32, %arg1: i32) -> (i32, i32) {
    %c0_i32 = arith.constant 0 : i32
    %c0_i32_0 = arith.constant 0 : i32
    return %arg0, %c0_i32 : i32, i32
  }
}

</mosaic_0001>

<llo_original>
// kernel: tpu_custom_call.1
$region0: #{tpu_custom_call.1}
  #allocation0 [shape = 'u32[]', space=smem, size = 0x4, offset = 0x4, fixed_abs, tag = 'smem constant byte address 0x4 - core index']
  #allocation1 [shape = 'u32[144,128]{1,0:T(1,128)}', space=vmem, size = 0x12000, scoped, tag = 'internal scratch']
  #allocation2 [shape = 'f32[8,128]{1,0:T(8,128)}', space=vmem, size = 0x1000, scoped, tag = 'scratch operand']
  %s0 = inlined_call_operand.hbm [shape: f32[8,8,256], index: 0, kind: input, shape index: {}]
  %s1 = inlined_call_operand.hbm [shape: f32[8,8,128], index: 1, kind: input, shape index: {}]
  %s2 = inlined_call_operand.hbm [shape: f32[8,128], index: 2, kind: input, shape index: {}]
  %s3 = inlined_call_operand.vmem [shape: f32[8,128], index: 3, kind: input, shape index: {}]
  %s4 = inlined_call_operand.hbm [shape: f32[128,256], index: 4, kind: input, shape index: {}]
  %s5 = inlined_call_operand.hbm [shape: f32[256,128], index: 5, kind: input, shape index: {}]
  %s6 = inlined_call_operand.hbm [shape: f32[8,8,128], index: 6, kind: output, shape index: {0}]
  %s7 = inlined_call_operand.hbm [shape: f32[8,128], index: 7, kind: output, shape index: {1}]
  %8 = xla_tuple %s6, %s7
  %s9 = sld [smem:[#allocation0]]
  $region70: #{tpu_custom_call.1} parent=0
    _
  %s11 = ssub.s32 1, %s9
  %s12 = scalar_select 0, %s11, %s9
  $region1: #{tpu_custom_call.1} parent=0
    #allocation3 [shape = 'u8[65536]{0}', space=vmem, size = 0x10000, scoped, tag = 'input window, operand 0, single buffered']
    #allocation4 [shape = 's32[1]{0}', space=sflag, size = 0x4, scoped, tag = 'scoped memory for tpu_custom_call.1']
    #allocation5 [shape = 's32[1]{0}', space=sflag, size = 0x4, scoped, tag = 'scoped memory for tpu_custom_call.1']
    #allocation6 [shape = 'u8[32768]{0}', space=vmem, size = 0x8000, scoped, tag = 'input window, operand 1, single buffered']
    #allocation7 [shape = 's32[1]{0}', space=sflag, size = 0x4, scoped, tag = 'scoped memory for tpu_custom_call.1']
    #allocation8 [shape = 'u8[4096]{0}', space=vmem, size = 0x1000, scoped, tag = 'input window, operand 2, single buffered']
    #allocation9 [shape = 'u8[131072]{0}', space=vmem, size = 0x20000, scoped, tag = 'input window, operand 4, single buffered']
    #allocation10 [shape = 's32[1]{0}', space=sflag, size = 0x4, scoped, tag = 'scoped memory for tpu_custom_call.1']
    #allocation11 [shape = 'u8[131072]{0}', space=vmem, size = 0x20000, scoped, tag = 'input window, operand 5, single buffered']
    #allocation12 [shape = 'u8[32768]{0}', space=vmem, size = 0x8000, scoped, tag = 'output window, operand 0, single buffered']
    #allocation13 [shape = 'u8[4096]{0}', space=vmem, size = 0x1000, scoped, tag = 'output window, operand 1, single buffered']
    #allocation14 [shape = 's32[1]{0}', space=sflag, size = 0x4, scoped, tag = 'scoped memory for tpu_custom_call.1']
    %13 = vsyncpa [#allocation4], 0
    %14 = vsyncpa [#allocation7], 0
    %15 = vsyncpa [#allocation10], 0
    %16 = vsyncpa [#allocation5], 0
    %17 = vsyncpa [#allocation14], 0
    // Predicated region
    $region2: #{tpu_custom_call.1} parent=1 // pred_check
      _
    $region3: #{tpu_custom_call.1} parent=1 // pred_check_branch
      %19 = sbr.rel (0) target = $region5
    $region4: #{tpu_custom_call.1} parent=1 // pred_region
      %s21 = ssub.s32 2048, 2048
      %22 = vsyncadd [#allocation4], %s21
      %s23 = sshll.u32 [#allocation3], 4
      %s24 = int_to_ptr.vmem [resolvable:$true] %s23
      %29 = dma.hbm_to_vmem [thread:$0]  %s0, 2048, %s24, [#allocation4], 256, 256, 16
    $region5: #{tpu_custom_call.1} parent=1 // pred_fallthru
      _
    // Predicated region
    $region6: #{tpu_custom_call.1} parent=1 // pred_check
      _
    $region7: #{tpu_custom_call.1} parent=1 // pred_check_branch
      %31 = sbr.rel (0) target = $region9
    $region8: #{tpu_custom_call.1} parent=1 // pred_region
      %s33 = ssub.s32 1024, 1024
      %34 = vsyncadd [#allocation7], %s33
      %s35 = sshll.u32 [#allocation6], 4
      %s36 = int_to_ptr.vmem [resolvable:$true] %s35
      %41 = dma.hbm_to_vmem [thread:$0]  %s1, 1024, %s36, [#allocation7], 128, 128, 8
    $region9: #{tpu_custom_call.1} parent=1 // pred_fallthru
      _
    // Predicated region
    $region10: #{tpu_custom_call.1} parent=1 // pred_check
      _
    $region11: #{tpu_custom_call.1} parent=1 // pred_check_branch
      %43 = sbr.rel (0) target = $region13
    $region12: #{tpu_custom_call.1} parent=1 // pred_region
      %s45 = ssub.s32 128, 128
      %46 = vsyncadd [#allocation7], %s45
      %s48 = sshll.u32 [#allocation8], 4
      %s49 = int_to_ptr.vmem [resolvable:$true] %s48
      %51 = dma.hbm_to_vmem [thread:$0]  %s2, 128, %s49, [#allocation7]
    $region13: #{tpu_custom_call.1} parent=1 // pred_fallthru
      _
    // Predicated region
    $region14: #{tpu_custom_call.1} parent=1 // pred_check
      _
    $region15: #{tpu_custom_call.1} parent=1 // pred_check_branch
      %53 = sbr.rel (0) target = $region17
    $region16: #{tpu_custom_call.1} parent=1 // pred_region
      _
    $region17: #{tpu_custom_call.1} parent=1 // pred_fallthru
      _
    // Predicated region
    $region18: #{tpu_custom_call.1} parent=1 // pred_check
      _
    $region19: #{tpu_custom_call.1} parent=1 // pred_check_branch
      %55 = sbr.rel (0) target = $region21
    $region20: #{tpu_custom_call.1} parent=1 // pred_region
      %s57 = ssub.s32 4096, 4096
      %58 = vsyncadd [#allocation10], %s57
      %s59 = sshll.u32 [#allocation9], 4
      %s60 = int_to_ptr.vmem [resolvable:$true] %s59
      %65 = dma.hbm_to_vmem [thread:$0]  %s4, 4096, %s60, [#allocation10], 256, 256, 16
    $region21: #{tpu_custom_call.1} parent=1 // pred_fallthru
      _
    // Predicated region
    $region22: #{tpu_custom_call.1} parent=1 // pred_check
      _
    $region23: #{tpu_custom_call.1} parent=1 // pred_check_branch
      %67 = sbr.rel (0) target = $region25
    $region24: #{tpu_custom_call.1} parent=1 // pred_region
      %s69 = ssub.s32 4096, 4096
      %70 = vsyncadd [#allocation10], %s69
      %s71 = sshll.u32 [#allocation11], 4
      %s72 = int_to_ptr.vmem [resolvable:$true] %s71
      %77 = dma.hbm_to_vmem [thread:$0]  %s5, 4096, %s72, [#allocation10], 128, 128, 8
    $region25: #{tpu_custom_call.1} parent=1 // pred_fallthru
      _
    // Predicated region
    $region26: #{tpu_custom_call.1} parent=1 // pred_check
      _
    $region27: #{tpu_custom_call.1} parent=1 // pred_check_branch
      %79 = sbr.rel (0) target = $region29
    $region28: #{tpu_custom_call.1} parent=1 // pred_region
      %80 = dma.done [#allocation4], 2048
    $region29: #{tpu_custom_call.1} parent=1 // pred_fallthru
      _
    // Predicated region
    $region30: #{tpu_custom_call.1} parent=1 // pred_check
      _
    $region31: #{tpu_custom_call.1} parent=1 // pred_check_branch
      %82 = sbr.rel (0) target = $region33
    $region32: #{tpu_custom_call.1} parent=1 // pred_region
      %83 = dma.done [#allocation7], 1024
    $region33: #{tpu_custom_call.1} parent=1 // pred_fallthru
      _
    // Predicated region
    $region34: #{tpu_custom_call.1} parent=1 // pred_check
      _
    $region35: #{tpu_custom_call.1} parent=1 // pred_check_branch
      %85 = sbr.rel (0) target = $region37
    $region36: #{tpu_custom_call.1} parent=1 // pred_region
      %86 = dma.done [#allocation7], 128
    $region37: #{tpu_custom_call.1} parent=1 // pred_fallthru
      _
    // Predicated region
    $region38: #{tpu_custom_call.1} parent=1 // pred_check
      _
    $region39: #{tpu_custom_call.1} parent=1 // pred_check_branch
      %88 = sbr.rel (0) target = $region41
    $region40: #{tpu_custom_call.1} parent=1 // pred_region
      %89 = dma.done [#allocation10], 4096
    $region41: #{tpu_custom_call.1} parent=1 // pred_fallthru
      _
    // Predicated region
    $region42: #{tpu_custom_call.1} parent=1 // pred_check
      _
    $region43: #{tpu_custom_call.1} parent=1 // pred_check_branch
      %91 = sbr.rel (0) target = $region45
    $region44: #{tpu_custom_call.1} parent=1 // pred_region
      %92 = dma.done [#allocation10], 4096
    $region45: #{tpu_custom_call.1} parent=1 // pred_fallthru
      _
    %p93 = scmp.eq.s32.totalorder 0, 0
    // Predicated region
    $region46: #{tpu_custom_call.1} parent=1 // pred_check
      %p94 = pneg %p93
    $region47: #{tpu_custom_call.1} parent=1 // pred_check_branch
      %96 = sbr.rel (%p94) target = $region49
    $region48: #{tpu_custom_call.1} parent=1 // pred_region
      %v97 = vld [vmem:[#allocation8] sm:$0xff]
      %98 = vst [vmem:[#allocation2] sm:$0xff] %v97
    $region49: #{tpu_custom_call.1} parent=1 // pred_fallthru
      _
    %v99 = vld [vmem:[#allocation9] sm:$0xff]
    %v100 = vld [vmem:[#allocation9 + $0x8] sm:$0xff]
    %v101 = vld [vmem:[#allocation9 + $0x10] sm:$0xff]
    %v102 = vld [vmem:[#allocation9 + $0x18] sm:$0xff]
    %v103 = vld [vmem:[#allocation9 + $0x20] sm:$0xff]
    %v104 = vld [vmem:[#allocation9 + $0x28] sm:$0xff]
    %v105 = vld [vmem:[#allocation9 + $0x30] sm:$0xff]
    %v106 = vld [vmem:[#allocation9 + $0x38] sm:$0xff]
    %v107 = vld [vmem:[#allocation9 + $0x40] sm:$0xff]
    %v108 = vld [vmem:[#allocation9 + $0x48] sm:$0xff]
    %v109 = vld [vmem:[#allocation9 + $0x50] sm:$0xff]
    %v110 = vld [vmem:[#allocation9 + $0x58] sm:$0xff]
    %v111 = vld [vmem:[#allocation9 + $0x60] sm:$0xff]
    %v112 = vld [vmem:[#allocation9 + $0x68] sm:$0xff]
    %v113 = vld [vmem:[#allocation9 + $0x70] sm:$0xff]
    %v114 = vld [vmem:[#allocation9 + $0x78] sm:$0xff]
    %v115 = vld [vmem:[#allocation9 + $0x80] sm:$0xff]
    %v116 = vld [vmem:[#allocation9 + $0x88] sm:$0xff]
    %v117 = vld [vmem:[#allocation9 + $0x90] sm:$0xff]
    %v118 = vld [vmem:[#allocation9 + $0x98] sm:$0xff]
    %v119 = vld [vmem:[#allocation9 + $0xa0] sm:$0xff]
    %v120 = vld [vmem:[#allocation9 + $0xa8] sm:$0xff]
    %v121 = vld [vmem:[#allocation9 + $0xb0] sm:$0xff]
    %v122 = vld [vmem:[#allocation9 + $0xb8] sm:$0xff]
    %v123 = vld [vmem:[#allocation9 + $0xc0] sm:$0xff]
    %v124 = vld [vmem:[#allocation9 + $0xc8] sm:$0xff]
    %v125 = vld [vmem:[#allocation9 + $0xd0] sm:$0xff]
    %v126 = vld [vmem:[#allocation9 + $0xd8] sm:$0xff]
    %v127 = vld [vmem:[#allocation9 + $0xe0] sm:$0xff]
    %v128 = vld [vmem:[#allocation9 + $0xe8] sm:$0xff]
    %v129 = vld [vmem:[#allocation9 + $0xf0] sm:$0xff]
    %v130 = vld [vmem:[#allocation9 + $0xf8] sm:$0xff]
    %v131 = vld [vmem:[#allocation11] sm:$0xff]
    %v132 = vld [vmem:[#allocation11 + $0x8] sm:$0xff]
    %v133 = vld [vmem:[#allocation11 + $0x10] sm:$0xff]
    %v134 = vld [vmem:[#allocation11 + $0x18] sm:$0xff]
    %v135 = vld [vmem:[#allocation11 + $0x20] sm:$0xff]
    %v136 = vld [vmem:[#allocation11 + $0x28] sm:$0xff]
    %v137 = vld [vmem:[#allocation11 + $0x30] sm:$0xff]
    %v138 = vld [vmem:[#allocation11 + $0x38] sm:$0xff]
    %v139 = vld [vmem:[#allocation11 + $0x40] sm:$0xff]
    %v140 = vld [vmem:[#allocation11 + $0x48] sm:$0xff]
    %v141 = vld [vmem:[#allocation11 + $0x50] sm:$0xff]
    %v142 = vld [vmem:[#allocation11 + $0x58] sm:$0xff]
    %v143 = vld [vmem:[#allocation11 + $0x60] sm:$0xff]
    %v144 = vld [vmem:[#allocation11 + $0x68] sm:$0xff]
    %v145 = vld [vmem:[#allocation11 + $0x70] sm:$0xff]
    %v146 = vld [vmem:[#allocation11 + $0x78] sm:$0xff]
    %v147 = vld [vmem:[#allocation11 + $0x80] sm:$0xff]
    %v148 = vld [vmem:[#allocation11 + $0x88] sm:$0xff]
    %v149 = vld [vmem:[#allocation11 + $0x90] sm:$0xff]
    %v150 = vld [vmem:[#allocation11 + $0x98] sm:$0xff]
    %v151 = vld [vmem:[#allocation11 + $0xa0] sm:$0xff]
    %v152 = vld [vmem:[#allocation11 + $0xa8] sm:$0xff]
    %v153 = vld [vmem:[#allocation11 + $0xb0] sm:$0xff]
    %v154 = vld [vmem:[#allocation11 + $0xb8] sm:$0xff]
    %v155 = vld [vmem:[#allocation11 + $0xc0] sm:$0xff]
    %v156 = vld [vmem:[#allocation11 + $0xc8] sm:$0xff]
    %v157 = vld [vmem:[#allocation11 + $0xd0] sm:$0xff]
    %v158 = vld [vmem:[#allocation11 + $0xd8] sm:$0xff]
    %v159 = vld [vmem:[#allocation11 + $0xe0] sm:$0xff]
    %v160 = vld [vmem:[#allocation11 + $0xe8] sm:$0xff]
    %v161 = vld [vmem:[#allocation11 + $0xf0] sm:$0xff]
    %v162 = vld [vmem:[#allocation11 + $0xf8] sm:$0xff]
    %v163 = vld [vmem:[%s3] sm:$0xff]
    %v164 = vld [vmem:[#allocation2] sm:$0xff]
    %v165 = vld [vmem:[#allocation3] sm:$0xff]
    %v166 = vld [vmem:[#allocation3 + $0x8] sm:$0xff]
    %167 = vmatprep.subr.mxu0 %v100
    %168 = vmatpush1.msra.mxu0 %v99
    %169 = vmatprep.subr.mxu0 %v102
    %170 = vmatpush1.msra.mxu0 %v101
    %171 = vmatprep.subr.mxu0 %v104
    %172 = vmatpush1.msra.mxu0 %v103
    %173 = vmatprep.subr.mxu0 %v106
    %174 = vmatpush1.msra.mxu0 %v105
    %175 = vmatprep.subr.mxu0 %v108
    %176 = vmatpush1.msra.mxu0 %v107
    %177 = vmatprep.subr.mxu0 %v110
    %178 = vmatpush1.msra.mxu0 %v109
    %179 = vmatprep.subr.mxu0 %v112
    %180 = vmatpush1.msra.mxu0 %v111
    %181 = vmatprep.subr.mxu0 %v114
    %182 = vmatpush1.msra.mxu0 %v113
    %183 = vmatprep.subr.mxu0 %v116
    %184 = vmatpush1.msra.mxu0 %v115
    %185 = vmatprep.subr.mxu0 %v118
    %186 = vmatpush1.msra.mxu0 %v117
    %187 = vmatprep.subr.mxu0 %v120
    %188 = vmatpush1.msra.mxu0 %v119
    %189 = vmatprep.subr.mxu0 %v122
    %190 = vmatpush1.msra.mxu0 %v121
    %191 = vmatprep.subr.mxu0 %v124
    %192 = vmatpush1.msra.mxu0 %v123
    %193 = vmatprep.subr.mxu0 %v126
    %194 = vmatpush1.msra.mxu0 %v125
    %195 = vmatprep.subr.mxu0 %v128
    %196 = vmatpush1.msra.mxu0 %v127
    %197 = vmatprep.subr.mxu0 %v130
    %198 = vmatpush1.msra.mxu0 %v129
    %199 = vmatprep.subr.mxu0 0.0
    %200 = vmatpush1.msra.mxu0 0.0
    %201 = vmatprep.subr.mxu0 0.0
    %202 = vmatpush1.msra.mxu0 0.0
    %203 = vmatprep.subr.mxu0 0.0
    %204 = vmatpush1.msra.mxu0 0.0
    %205 = vmatprep.subr.mxu0 0.0
    %206 = vmatpush1.msra.mxu0 0.0
    %207 = vmatprep.subr.mxu0 0.0
    %208 = vmatpush1.msra.mxu0 0.0
    %209 = vmatprep.subr.mxu0 0.0
    %210 = vmatpush1.msra.mxu0 0.0
    %211 = vmatprep.subr.mxu0 0.0
    %212 = vmatpush1.msra.mxu0 0.0
    %213 = vmatprep.subr.mxu0 0.0
    %214 = vmatpush1.msra.mxu0 0.0
    %215 = vmatprep.subr.mxu0 0.0
    %216 = vmatpush1.msra.mxu0 0.0
    %217 = vmatprep.subr.mxu0 0.0
    %218 = vmatpush1.msra.mxu0 0.0
    %219 = vmatprep.subr.mxu0 0.0
    %220 = vmatpush1.msra.mxu0 0.0
    %221 = vmatprep.subr.mxu0 0.0
    %222 = vmatpush1.msra.mxu0 0.0
    %223 = vmatprep.subr.mxu0 0.0
    %224 = vmatpush1.msra.mxu0 0.0
    %225 = vmatprep.subr.mxu0 0.0
    %226 = vmatpush1.msra.mxu0 0.0
    %227 = vmatprep.subr.mxu0 0.0
    %228 = vmatpush1.msra.mxu0 0.0
    %229 = vmatprep.subr.mxu0 0.0
    %230 = vmatpush1.msra.mxu0 0.0
    %231 = vmatprep.mubr.f32.mxu0 0.0
    %232 = vmatmul.mubr.f32.gmra.mrb[0].mxu0 %v164
    %v233 = vpop.f32.mrb[0].mxu0
    %v234 = vadd.f32 0.0, %v233
    %v235 = vpop.f32.mrb[0].mxu0
    %v236 = vadd.f32 0.0, %v235
    %237 = vdwg.mxu0
    %v238 = vadd.f32 %v165, %v234
    %v239 = vadd.f32 %v166, %v236
    %v240 = vxor.u32 %v238, 2147483648
    %v241 = vmul.f32 %v240, 1.442695
    %v242 = vpow.pop %v241
    %v243 = vadd.f32 %v242, 1.0
    %v244 = vrcp.pop %v243
    %v245 = vmul.f32 1.0, %v244
    %v246 = vxor.u32 %v239, 2147483648
    %v247 = vmul.f32 %v246, 1.442695
    %v248 = vpow.pop %v247
    %v249 = vadd.f32 %v248, 1.0
    %v250 = vrcp.pop %v249
    %v251 = vmul.f32 1.0, %v250
    %v252 = vmul.f32 %v245, %v164
    %v253 = vmul.f32 %v245, %v163
    %v254 = vld [vmem:[#allocation6] sm:$0xff]
    %255 = vmatprep.subr.mxu0 0.0
    %256 = vmatpush1.msra.mxu0 %v131
    %257 = vmatprep.subr.mxu0 0.0
    %258 = vmatpush1.msra.mxu0 %v132
    %259 = vmatprep.subr.mxu0 0.0
    %260 = vmatpush1.msra.mxu0 %v133
    %261 = vmatprep.subr.mxu0 0.0
    %262 = vmatpush1.msra.mxu0 %v134
    %263 = vmatprep.subr.mxu0 0.0
    %264 = vmatpush1.msra.mxu0 %v135
    %265 = vmatprep.subr.mxu0 0.0
    %266 = vmatpush1.msra.mxu0 %v136
    %267 = vmatprep.subr.mxu0 0.0
    %268 = vmatpush1.msra.mxu0 %v137
    %269 = vmatprep.subr.mxu0 0.0
    %270 = vmatpush1.msra.mxu0 %v138
    %271 = vmatprep.subr.mxu0 0.0
    %272 = vmatpush1.msra.mxu0 %v139
    %273 = vmatprep.subr.mxu0 0.0
    %274 = vmatpush1.msra.mxu0 %v140
    %275 = vmatprep.subr.mxu0 0.0
    %276 = vmatpush1.msra.mxu0 %v141
    %277 = vmatprep.subr.mxu0 0.0
    %278 = vmatpush1.msra.mxu0 %v142
    %279 = vmatprep.subr.mxu0 0.0
    %280 = vmatpush1.msra.mxu0 %v143
    %281 = vmatprep.subr.mxu0 0.0
    %282 = vmatpush1.msra.mxu0 %v144
    %283 = vmatprep.subr.mxu0 0.0
    %284 = vmatpush1.msra.mxu0 %v145
    %285 = vmatprep.subr.mxu0 0.0
    %286 = vmatpush1.msra.mxu0 %v146
    %287 = vmatprep.subr.mxu0 0.0
    %288 = vmatpush1.msra.mxu0 %v147
    %289 = vmatprep.subr.mxu0 0.0
    %290 = vmatpush1.msra.mxu0 %v148
    %291 = vmatprep.subr.mxu0 0.0
    %292 = vmatpush1.msra.mxu0 %v149
    %293 = vmatprep.subr.mxu0 0.0
    %294 = vmatpush1.msra.mxu0 %v150
    %295 = vmatprep.subr.mxu0 0.0
    %296 = vmatpush1.msra.mxu0 %v151
    %297 = vmatprep.subr.mxu0 0.0
    %298 = vmatpush1.msra.mxu0 %v152
    %299 = vmatprep.subr.mxu0 0.0
    %300 = vmatpush1.msra.mxu0 %v153
    %301 = vmatprep.subr.mxu0 0.0
    %302 = vmatpush1.msra.mxu0 %v154
    %303 = vmatprep.subr.mxu0 0.0
    %304 = vmatpush1.msra.mxu0 %v155
    %305 = vmatprep.subr.mxu0 0.0
    %306 = vmatpush1.msra.mxu0 %v156
    %307 = vmatprep.subr.mxu0 0.0
    %308 = vmatpush1.msra.mxu0 %v157
    %309 = vmatprep.subr.mxu0 0.0
    %310 = vmatpush1.msra.mxu0 %v158
    %311 = vmatprep.subr.mxu0 0.0
    %312 = vmatpush1.msra.mxu0 %v159
    %313 = vmatprep.subr.mxu0 0.0
    %314 = vmatpush1.msra.mxu0 %v160
    %315 = vmatprep.subr.mxu0 0.0
    %316 = vmatpush1.msra.mxu0 %v161
    %317 = vmatprep.subr.mxu0 0.0
    %318 = vmatpush1.msra.mxu0 %v162
    %319 = vmatprep.mubr.f32.mxu0 %v253
    %320 = vmatmul.mubr.f32.gmra.mrb[0].mxu0 %v252
    %v321 = vpop.f32.mrb[0].mxu0
    %v322 = vadd.f32 0.0, %v321
    %v323 = vpop.f32.mrb[0].mxu0
    %324 = vdwg.mxu0
    %v325 = vadd.f32 %v254, %v322
    %v326 = vtanh.pop %v325
    %v327 = vmul.f32 %v251, %v164
    %v328 = vsub.f32 1.0, %v251
    %v329 = vmul.f32 %v328, %v326
    %v330 = vadd.f32 %v327, %v329
    %331 = vst [vmem:[#allocation12] sm:$0xff] %v330
    %s332 = scalar_lea.vmem [#allocation3], 16
    %v333 = vld [vmem:[%s332] sm:$0xff]
    %v334 = vld [vmem:[%s332 + $0x8] sm:$0xff]
    %335 = vmatprep.subr.mxu0 %v100
    %336 = vmatpush1.msra.mxu0 %v99
    %337 = vmatprep.subr.mxu0 %v102
    %338 = vmatpush1.msra.mxu0 %v101
    %339 = vmatprep.subr.mxu0 %v104
    %340 = vmatpush1.msra.mxu0 %v103
    %341 = vmatprep.subr.mxu0 %v106
    %342 = vmatpush1.msra.mxu0 %v105
    %343 = vmatprep.subr.mxu0 %v108
    %344 = vmatpush1.msra.mxu0 %v107
    %345 = vmatprep.subr.mxu0 %v110
    %346 = vmatpush1.msra.mxu0 %v109
    %347 = vmatprep.subr.mxu0 %v112
    %348 = vmatpush1.msra.mxu0 %v111
    %349 = vmatprep.subr.mxu0 %v114
    %350 = vmatpush1.msra.mxu0 %v113
    %351 = vmatprep.subr.mxu0 %v116
    %352 = vmatpush1.msra.mxu0 %v115
    %353 = vmatprep.subr.mxu0 %v118
    %354 = vmatpush1.msra.mxu0 %v117
    %355 = vmatprep.subr.mxu0 %v120
    %356 = vmatpush1.msra.mxu0 %v119
    %357 = vmatprep.subr.mxu0 %v122
    %358 = vmatpush1.msra.mxu0 %v121
    %359 = vmatprep.subr.mxu0 %v124
    %360 = vmatpush1.msra.mxu0 %v123
    %361 = vmatprep.subr.mxu0 %v126
    %362 = vmatpush1.msra.mxu0 %v125
    %363 = vmatprep.subr.mxu0 %v128
    %364 = vmatpush1.msra.mxu0 %v127
    %365 = vmatprep.subr.mxu0 %v130
    %366 = vmatpush1.msra.mxu0 %v129
    %367 = vmatprep.subr.mxu0 0.0
    %368 = vmatpush1.msra.mxu0 0.0
    %369 = vmatprep.subr.mxu0 0.0
    %370 = vmatpush1.msra.mxu0 0.0
    %371 = vmatprep.subr.mxu0 0.0
    %372 = vmatpush1.msra.mxu0 0.0
    %373 = vmatprep.subr.mxu0 0.0
    %374 = vmatpush1.msra.mxu0 0.0
    %375 = vmatprep.subr.mxu0 0.0
    %376 = vmatpush1.msra.mxu0 0.0
    %377 = vmatprep.subr.mxu0 0.0
    %378 = vmatpush1.msra.mxu0 0.0
    %379 = vmatprep.subr.mxu0 0.0
    %380 = vmatpush1.msra.mxu0 0.0
    %381 = vmatprep.subr.mxu0 0.0
    %382 = vmatpush1.msra.mxu0 0.0
    %383 = vmatprep.subr.mxu0 0.0
    %384 = vmatpush1.msra.mxu0 0.0
    %385 = vmatprep.subr.mxu0 0.0
    %386 = vmatpush1.msra.mxu0 0.0
    %387 = vmatprep.subr.mxu0 0.0
    %388 = vmatpush1.msra.mxu0 0.0
    %389 = vmatprep.subr.mxu0 0.0
    %390 = vmatpush1.msra.mxu0 0.0
    %391 = vmatprep.subr.mxu0 0.0
    %392 = vmatpush1.msra.mxu0 0.0
    %393 = vmatprep.subr.mxu0 0.0
    %394 = vmatpush1.msra.mxu0 0.0
    %395 = vmatprep.subr.mxu0 0.0
    %396 = vmatpush1.msra.mxu0 0.0
    %397 = vmatprep.subr.mxu0 0.0
    %398 = vmatpush1.msra.mxu0 0.0
    %399 = vmatprep.mubr.f32.mxu0 0.0
    %400 = vmatmul.mubr.f32.gmra.mrb[0].mxu0 %v330
    %v401 = vpop.f32.mrb[0].mxu0
    %v402 = vadd.f32 0.0, %v401
    %v403 = vpop.f32.mrb[0].mxu0
    %v404 = vadd.f32 0.0, %v403
    %405 = vdwg.mxu0
    %v406 = vadd.f32 %v333, %v402
    %v407 = vadd.f32 %v334, %v404
    %v408 = vxor.u32 %v406, 2147483648
    %v409 = vmul.f32 %v408, 1.442695
    %v410 = vpow.pop %v409
    %v411 = vadd.f32 %v410, 1.0
    %v412 = vrcp.pop %v411
    %v413 = vmul.f32 1.0, %v412
    %v414 = vxor.u32 %v407, 2147483648
    %v415 = vmul.f32 %v414, 1.442695
    %v416 = vpow.pop %v415
    %v417 = vadd.f32 %v416, 1.0
    %v418 = vrcp.pop %v417
    %v419 = vmul.f32 1.0, %v418
    %v420 = vmul.f32 %v413, %v330
    %v421 = vmul.f32 %v413, %v163
    %s422 = scalar_lea.vmem [#allocation6], 8
    %v423 = vld [vmem:[%s422] sm:$0xff]
    %424 = vmatprep.subr.mxu0 0.0
    %425 = vmatpush1.msra.mxu0 %v131
    %426 = vmatprep.subr.mxu0 0.0
    %427 = vmatpush1.msra.mxu0 %v132
    %428 = vmatprep.subr.mxu0 0.0
    %429 = vmatpush1.msra.mxu0 %v133
    %430 = vmatprep.subr.mxu0 0.0
    %431 = vmatpush1.msra.mxu0 %v134
    %432 = vmatprep.subr.mxu0 0.0
    %433 = vmatpush1.msra.mxu0 %v135
    %434 = vmatprep.subr.mxu0 0.0
    %435 = vmatpush1.msra.mxu0 %v136
    %436 = vmatprep.subr.mxu0 0.0
    %437 = vmatpush1.msra.mxu0 %v137
    %438 = vmatprep.subr.mxu0 0.0
    %439 = vmatpush1.msra.mxu0 %v138
    %440 = vmatprep.subr.mxu0 0.0
    %441 = vmatpush1.msra.mxu0 %v139
    %442 = vmatprep.subr.mxu0 0.0
    %443 = vmatpush1.msra.mxu0 %v140
    %444 = vmatprep.subr.mxu0 0.0
    %445 = vmatpush1.msra.mxu0 %v141
    %446 = vmatprep.subr.mxu0 0.0
    %447 = vmatpush1.msra.mxu0 %v142
    %448 = vmatprep.subr.mxu0 0.0
    %449 = vmatpush1.msra.mxu0 %v143
    %450 = vmatprep.subr.mxu0 0.0
    %451 = vmatpush1.msra.mxu0 %v144
    %452 = vmatprep.subr.mxu0 0.0
    %453 = vmatpush1.msra.mxu0 %v145
    %454 = vmatprep.subr.mxu0 0.0
    %455 = vmatpush1.msra.mxu0 %v146
    %456 = vmatprep.subr.mxu0 0.0
    %457 = vmatpush1.msra.mxu0 %v147
    %458 = vmatprep.subr.mxu0 0.0
    %459 = vmatpush1.msra.mxu0 %v148
    %460 = vmatprep.subr.mxu0 0.0
    %461 = vmatpush1.msra.mxu0 %v149
    %462 = vmatprep.subr.mxu0 0.0
    %463 = vmatpush1.msra.mxu0 %v150
    %464 = vmatprep.subr.mxu0 0.0
    %465 = vmatpush1.msra.mxu0 %v151
    %466 = vmatprep.subr.mxu0 0.0
    %467 = vmatpush1.msra.mxu0 %v152
    %468 = vmatprep.subr.mxu0 0.0
    %469 = vmatpush1.msra.mxu0 %v153
    %470 = vmatprep.subr.mxu0 0.0
    %471 = vmatpush1.msra.mxu0 %v154
    %472 = vmatprep.subr.mxu0 0.0
    %473 = vmatpush1.msra.mxu0 %v155
    %474 = vmatprep.subr.mxu0 0.0
    %475 = vmatpush1.msra.mxu0 %v156
    %476 = vmatprep.subr.mxu0 0.0
    %477 = vmatpush1.msra.mxu0 %v157
    %478 = vmatprep.subr.mxu0 0.0
    %479 = vmatpush1.msra.mxu0 %v158
    %480 = vmatprep.subr.mxu0 0.0
    %481 = vmatpush1.msra.mxu0 %v159
    %482 = vmatprep.subr.mxu0 0.0
    %483 = vmatpush1.msra.mxu0 %v160
    %484 = vmatprep.subr.mxu0 0.0
    %485 = vmatpush1.msra.mxu0 %v161
    %486 = vmatprep.subr.mxu0 0.0
    %487 = vmatpush1.msra.mxu0 %v162
    %488 = vmatprep.mubr.f32.mxu0 %v421
    %489 = vmatmul.mubr.f32.gmra.mrb[0].mxu0 %v420
    %v490 = vpop.f32.mrb[0].mxu0
    %v491 = vadd.f32 0.0, %v490
    %v492 = vpop.f32.mrb[0].mxu0
    %493 = vdwg.mxu0
    %v494 = vadd.f32 %v423, %v491
    %v495 = vtanh.pop %v494
    %v496 = vmul.f32 %v419, %v330
    %v497 = vsub.f32 1.0, %v419
    %v498 = vmul.f32 %v497, %v495
    %v499 = vadd.f32 %v496, %v498
    %s500 = scalar_lea.vmem [#allocation12], 8
    %501 = vst [vmem:[%s500] sm:$0xff] %v499
    %s502 = scalar_lea.vmem [#allocation3], 32
    %v503 = vld [vmem:[%s502] sm:$0xff]
    %v504 = vld [vmem:[%s502 + $0x8] sm:$0xff]
    %505 = vmatprep.subr.mxu0 %v100
    %506 = vmatpush1.msra.mxu0 %v99
    %507 = vmatprep.subr.mxu0 %v102
    %508 = vmatpush1.msra.mxu0 %v101
    %509 = vmatprep.subr.mxu0 %v104
    %510 = vmatpush1.msra.mxu0 %v103
    %511 = vmatprep.subr.mxu0 %v106
    %512 = vmatpush1.msra.mxu0 %v105
    %513 = vmatprep.subr.mxu0 %v108
    %514 = vmatpush1.msra.mxu0 %v107
    %515 = vmatprep.subr.mxu0 %v110
    %516 = vmatpush1.msra.mxu0 %v109
    %517 = vmatprep.subr.mxu0 %v112
    %518 = vmatpush1.msra.mxu0 %v111
    %519 = vmatprep.subr.mxu0 %v114
    %520 = vmatpush1.msra.mxu0 %v113
    %521 = vmatprep.subr.mxu0 %v116
    %522 = vmatpush1.msra.mxu0 %v115
    %523 = vmatprep.subr.mxu0 %v118
    %524 = vmatpush1.msra.mxu0 %v117
    %525 = vmatprep.subr.mxu0 %v120
    %526 = vmatpush1.msra.mxu0 %v119
    %527 = vmatprep.subr.mxu0 %v122
    %528 = vmatpush1.msra.mxu0 %v121
    %529 = vmatprep.subr.mxu0 %v124
    %530 = vmatpush1.msra.mxu0 %v123
    %531 = vmatprep.subr.mxu0 %v126
    %532 = vmatpush1.msra.mxu0 %v125
    %533 = vmatprep.subr.mxu0 %v128
    %534 = vmatpush1.msra.mxu0 %v127
    %535 = vmatprep.subr.mxu0 %v130
    %536 = vmatpush1.msra.mxu0 %v129
    %537 = vmatprep.subr.mxu0 0.0
    %538 = vmatpush1.msra.mxu0 0.0
    %539 = vmatprep.subr.mxu0 0.0
    %540 = vmatpush1.msra.mxu0 0.0
    %541 = vmatprep.subr.mxu0 0.0
    %542 = vmatpush1.msra.mxu0 0.0
    %543 = vmatprep.subr.mxu0 0.0
    %544 = vmatpush1.msra.mxu0 0.0
    %545 = vmatprep.subr.mxu0 0.0
    %546 = vmatpush1.msra.mxu0 0.0
    %547 = vmatprep.subr.mxu0 0.0
    %548 = vmatpush1.msra.mxu0 0.0
    %549 = vmatprep.subr.mxu0 0.0
    %550 = vmatpush1.msra.mxu0 0.0
    %551 = vmatprep.subr.mxu0 0.0
    %552 = vmatpush1.msra.mxu0 0.0
    %553 = vmatprep.subr.mxu0 0.0
    %554 = vmatpush1.msra.mxu0 0.0
    %555 = vmatprep.subr.mxu0 0.0
    %556 = vmatpush1.msra.mxu0 0.0
    %557 = vmatprep.subr.mxu0 0.0
    %558 = vmatpush1.msra.mxu0 0.0
    %559 = vmatprep.subr.mxu0 0.0
    %560 = vmatpush1.msra.mxu0 0.0
    %561 = vmatprep.subr.mxu0 0.0
    %562 = vmatpush1.msra.mxu0 0.0
    %563 = vmatprep.subr.mxu0 0.0
    %564 = vmatpush1.msra.mxu0 0.0
    %565 = vmatprep.subr.mxu0 0.0
    %566 = vmatpush1.msra.mxu0 0.0
    %567 = vmatprep.subr.mxu0 0.0
    %568 = vmatpush1.msra.mxu0 0.0
    %569 = vmatprep.mubr.f32.mxu0 0.0
    %570 = vmatmul.mubr.f32.gmra.mrb[0].mxu0 %v499
    %v571 = vpop.f32.mrb[0].mxu0
    %v572 = vadd.f32 0.0, %v571
    %v573 = vpop.f32.mrb[0].mxu0
    %v574 = vadd.f32 0.0, %v573
    %575 = vdwg.mxu0
    %v576 = vadd.f32 %v503, %v572
    %v577 = vadd.f32 %v504, %v574
    %v578 = vxor.u32 %v576, 2147483648
    %v579 = vmul.f32 %v578, 1.442695
    %v580 = vpow.pop %v579
    %v581 = vadd.f32 %v580, 1.0
    %v582 = vrcp.pop %v581
    %v583 = vmul.f32 1.0, %v582
    %v584 = vxor.u32 %v577, 2147483648
    %v585 = vmul.f32 %v584, 1.442695
    %v586 = vpow.pop %v585
    %v587 = vadd.f32 %v586, 1.0
    %v588 = vrcp.pop %v587
    %v589 = vmul.f32 1.0, %v588
    %v590 = vmul.f32 %v583, %v499
    %v591 = vmul.f32 %v583, %v163
    %s592 = scalar_lea.vmem [#allocation6], 16
    %v593 = vld [vmem:[%s592] sm:$0xff]
    %594 = vmatprep.subr.mxu0 0.0
    %595 = vmatpush1.msra.mxu0 %v131
    %596 = vmatprep.subr.mxu0 0.0
    %597 = vmatpush1.msra.mxu0 %v132
    %598 = vmatprep.subr.mxu0 0.0
    %599 = vmatpush1.msra.mxu0 %v133
    %600 = vmatprep.subr.mxu0 0.0
    %601 = vmatpush1.msra.mxu0 %v134
    %602 = vmatprep.subr.mxu0 0.0
    %603 = vmatpush1.msra.mxu0 %v135
    %604 = vmatprep.subr.mxu0 0.0
    %605 = vmatpush1.msra.mxu0 %v136
    %606 = vmatprep.subr.mxu0 0.0
    %607 = vmatpush1.msra.mxu0 %v137
    %608 = vmatprep.subr.mxu0 0.0
    %609 = vmatpush1.msra.mxu0 %v138
    %610 = vmatprep.subr.mxu0 0.0
    %611 = vmatpush1.msra.mxu0 %v139
    %612 = vmatprep.subr.mxu0 0.0
    %613 = vmatpush1.msra.mxu0 %v140
    %614 = vmatprep.subr.mxu0 0.0
    %615 = vmatpush1.msra.mxu0 %v141
    %616 = vmatprep.subr.mxu0 0.0
    %617 = vmatpush1.msra.mxu0 %v142
    %618 = vmatprep.subr.mxu0 0.0
    %619 = vmatpush1.msra.mxu0 %v143
    %620 = vmatprep.subr.mxu0 0.0
    %621 = vmatpush1.msra.mxu0 %v144
    %622 = vmatprep.subr.mxu0 0.0
    %623 = vmatpush1.msra.mxu0 %v145
    %624 = vmatprep.subr.mxu0 0.0
    %625 = vmatpush1.msra.mxu0 %v146
    %626 = vmatprep.subr.mxu0 0.0
    %627 = vmatpush1.msra.mxu0 %v147
    %628 = vmatprep.subr.mxu0 0.0
    %629 = vmatpush1.msra.mxu0 %v148
    %630 = vmatprep.subr.mxu0 0.0
    %631 = vmatpush1.msra.mxu0 %v149
    %632 = vmatprep.subr.mxu0 0.0
    %633 = vmatpush1.msra.mxu0 %v150
    %634 = vmatprep.subr.mxu0 0.0
    %635 = vmatpush1.msra.mxu0 %v151
    %636 = vmatprep.subr.mxu0 0.0
    %637 = vmatpush1.msra.mxu0 %v152
    %638 = vmatprep.subr.mxu0 0.0
    %639 = vmatpush1.msra.mxu0 %v153
    %640 = vmatprep.subr.mxu0 0.0
    %641 = vmatpush1.msra.mxu0 %v154
    %642 = vmatprep.subr.mxu0 0.0
    %643 = vmatpush1.msra.mxu0 %v155
    %644 = vmatprep.subr.mxu0 0.0
    %645 = vmatpush1.msra.mxu0 %v156
    %646 = vmatprep.subr.mxu0 0.0
    %647 = vmatpush1.msra.mxu0 %v157
    %648 = vmatprep.subr.mxu0 0.0
    %649 = vmatpush1.msra.mxu0 %v158
    %650 = vmatprep.subr.mxu0 0.0
    %651 = vmatpush1.msra.mxu0 %v159
    %652 = vmatprep.subr.mxu0 0.0
    %653 = vmatpush1.msra.mxu0 %v160
    %654 = vmatprep.subr.mxu0 0.0
    %655 = vmatpush1.msra.mxu0 %v161
    %656 = vmatprep.subr.mxu0 0.0
    %657 = vmatpush1.msra.mxu0 %v162
    %658 = vmatprep.mubr.f32.mxu0 %v591
    %659 = vmatmul.mubr.f32.gmra.mrb[0].mxu0 %v590
    %v660 = vpop.f32.mrb[0].mxu0
    %v661 = vadd.f32 0.0, %v660
    %v662 = vpop.f32.mrb[0].mxu0
    %663 = vdwg.mxu0
    %v664 = vadd.f32 %v593, %v661
    %v665 = vtanh.pop %v664
    %v666 = vmul.f32 %v589, %v499
    %v667 = vsub.f32 1.0, %v589
    %v668 = vmul.f32 %v667, %v665
    %v669 = vadd.f32 %v666, %v668
    %s670 = scalar_lea.vmem [#allocation12], 16
    %671 = vst [vmem:[%s670] sm:$0xff] %v669
    %s672 = scalar_lea.vmem [#allocation3], 48
    %v673 = vld [vmem:[%s672] sm:$0xff]
    %v674 = vld [vmem:[%s672 + $0x8] sm:$0xff]
    %675 = vmatprep.subr.mxu0 %v100
    %676 = vmatpush1.msra.mxu0 %v99
    %677 = vmatprep.subr.mxu0 %v102
    %678 = vmatpush1.msra.mxu0 %v101
    %679 = vmatprep.subr.mxu0 %v104
    %680 = vmatpush1.msra.mxu0 %v103
    %681 = vmatprep.subr.mxu0 %v106
    %682 = vmatpush1.msra.mxu0 %v105
    %683 = vmatprep.subr.mxu0 %v108
    %684 = vmatpush1.msra.mxu0 %v107
    %685 = vmatprep.subr.mxu0 %v110
    %686 = vmatpush1.msra.mxu0 %v109
    %687 = vmatprep.subr.mxu0 %v112
    %688 = vmatpush1.msra.mxu0 %v111
    %689 = vmatprep.subr.mxu0 %v114
    %690 = vmatpush1.msra.mxu0 %v113
    %691 = vmatprep.subr.mxu0 %v116
    %692 = vmatpush1.msra.mxu0 %v115
    %693 = vmatprep.subr.mxu0 %v118
    %694 = vmatpush1.msra.mxu0 %v117
    %695 = vmatprep.subr.mxu0 %v120
    %696 = vmatpush1.msra.mxu0 %v119
    %697 = vmatprep.subr.mxu0 %v122
    %698 = vmatpush1.msra.mxu0 %v121
    %699 = vmatprep.subr.mxu0 %v124
    %700 = vmatpush1.msra.mxu0 %v123
    %701 = vmatprep.subr.mxu0 %v126
    %702 = vmatpush1.msra.mxu0 %v125
    %703 = vmatprep.subr.mxu0 %v128
    %704 = vmatpush1.msra.mxu0 %v127
    %705 = vmatprep.subr.mxu0 %v130
    %706 = vmatpush1.msra.mxu0 %v129
    %707 = vmatprep.subr.mxu0 0.0
    %708 = vmatpush1.msra.mxu0 0.0
    %709 = vmatprep.subr.mxu0 0.0
    %710 = vmatpush1.msra.mxu0 0.0
    %711 = vmatprep.subr.mxu0 0.0
    %712 = vmatpush1.msra.mxu0 0.0
    %713 = vmatprep.subr.mxu0 0.0
    %714 = vmatpush1.msra.mxu0 0.0
    %715 = vmatprep.subr.mxu0 0.0
    %716 = vmatpush1.msra.mxu0 0.0
    %717 = vmatprep.subr.mxu0 0.0
    %718 = vmatpush1.msra.mxu0 0.0
    %719 = vmatprep.subr.mxu0 0.0
    %720 = vmatpush1.msra.mxu0 0.0
    %721 = vmatprep.subr.mxu0 0.0
    %722 = vmatpush1.msra.mxu0 0.0
    %723 = vmatprep.subr.mxu0 0.0
    %724 = vmatpush1.msra.mxu0 0.0
    %725 = vmatprep.subr.mxu0 0.0
    %726 = vmatpush1.msra.mxu0 0.0
    %727 = vmatprep.subr.mxu0 0.0
    %728 = vmatpush1.msra.mxu0 0.0
    %729 = vmatprep.subr.mxu0 0.0
    %730 = vmatpush1.msra.mxu0 0.0
    %731 = vmatprep.subr.mxu0 0.0
    %732 = vmatpush1.msra.mxu0 0.0
    %733 = vmatprep.subr.mxu0 0.0
    %734 = vmatpush1.msra.mxu0 0.0
    %735 = vmatprep.subr.mxu0 0.0
    %736 = vmatpush1.msra.mxu0 0.0
    %737 = vmatprep.subr.mxu0 0.0
    %738 = vmatpush1.msra.mxu0 0.0
    %739 = vmatprep.mubr.f32.mxu0 0.0
    %740 = vmatmul.mubr.f32.gmra.mrb[0].mxu0 %v669
    %v741 = vpop.f32.mrb[0].mxu0
    %v742 = vadd.f32 0.0, %v741
    %v743 = vpop.f32.mrb[0].mxu0
    %v744 = vadd.f32 0.0, %v743
    %745 = vdwg.mxu0
    %v746 = vadd.f32 %v673, %v742
    %v747 = vadd.f32 %v674, %v744
    %v748 = vxor.u32 %v746, 2147483648
    %v749 = vmul.f32 %v748, 1.442695
    %v750 = vpow.pop %v749
    %v751 = vadd.f32 %v750, 1.0
    %v752 = vrcp.pop %v751
    %v753 = vmul.f32 1.0, %v752
    %v754 = vxor.u32 %v747, 2147483648
    %v755 = vmul.f32 %v754, 1.442695
    %v756 = vpow.pop %v755
    %v757 = vadd.f32 %v756, 1.0
    %v758 = vrcp.pop %v757
    %v759 = vmul.f32 1.0, %v758
    %v760 = vmul.f32 %v753, %v669
    %v761 = vmul.f32 %v753, %v163
    %s762 = scalar_lea.vmem [#allocation6], 24
    %v763 = vld [vmem:[%s762] sm:$0xff]
    %764 = vmatprep.subr.mxu0 0.0
    %765 = vmatpush1.msra.mxu0 %v131
    %766 = vmatprep.subr.mxu0 0.0
    %767 = vmatpush1.msra.mxu0 %v132
    %768 = vmatprep.subr.mxu0 0.0
    %769 = vmatpush1.msra.mxu0 %v133
    %770 = vmatprep.subr.mxu0 0.0
    %771 = vmatpush1.msra.mxu0 %v134
    %772 = vmatprep.subr.mxu0 0.0
    %773 = vmatpush1.msra.mxu0 %v135
    %774 = vmatprep.subr.mxu0 0.0
    %775 = vmatpush1.msra.mxu0 %v136
    %776 = vmatprep.subr.mxu0 0.0
    %777 = vmatpush1.msra.mxu0 %v137
    %778 = vmatprep.subr.mxu0 0.0
    %779 = vmatpush1.msra.mxu0 %v138
    %780 = vmatprep.subr.mxu0 0.0
    %781 = vmatpush1.msra.mxu0 %v139
    %782 = vmatprep.subr.mxu0 0.0
    %783 = vmatpush1.msra.mxu0 %v140
    %784 = vmatprep.subr.mxu0 0.0
    %785 = vmatpush1.msra.mxu0 %v141
    %786 = vmatprep.subr.mxu0 0.0
    %787 = vmatpush1.msra.mxu0 %v142
    %788 = vmatprep.subr.mxu0 0.0
    %789 = vmatpush1.msra.mxu0 %v143
    %790 = vmatprep.subr.mxu0 0.0
    %791 = vmatpush1.msra.mxu0 %v144
    %792 = vmatprep.subr.mxu0 0.0
    %793 = vmatpush1.msra.mxu0 %v145
    %794 = vmatprep.subr.mxu0 0.0
    %795 = vmatpush1.msra.mxu0 %v146
    %796 = vmatprep.subr.mxu0 0.0
    %797 = vmatpush1.msra.mxu0 %v147
    %798 = vmatprep.subr.mxu0 0.0
    %799 = vmatpush1.msra.mxu0 %v148
    %800 = vmatprep.subr.mxu0 0.0
    %801 = vmatpush1.msra.mxu0 %v149
    %802 = vmatprep.subr.mxu0 0.0
    %803 = vmatpush1.msra.mxu0 %v150
    %804 = vmatprep.subr.mxu0 0.0
    %805 = vmatpush1.msra.mxu0 %v151
    %806 = vmatprep.subr.mxu0 0.0
    %807 = vmatpush1.msra.mxu0 %v152
    %808 = vmatprep.subr.mxu0 0.0
    %809 = vmatpush1.msra.mxu0 %v153
    %810 = vmatprep.subr.mxu0 0.0
    %811 = vmatpush1.msra.mxu0 %v154
    %812 = vmatprep.subr.mxu0 0.0
    %813 = vmatpush1.msra.mxu0 %v155
    %814 = vmatprep.subr.mxu0 0.0
    %815 = vmatpush1.msra.mxu0 %v156
    %816 = vmatprep.subr.mxu0 0.0
    %817 = vmatpush1.msra.mxu0 %v157
    %818 = vmatprep.subr.mxu0 0.0
    %819 = vmatpush1.msra.mxu0 %v158
    %820 = vmatprep.subr.mxu0 0.0
    %821 = vmatpush1.msra.mxu0 %v159
    %822 = vmatprep.subr.mxu0 0.0
    %823 = vmatpush1.msra.mxu0 %v160
    %824 = vmatprep.subr.mxu0 0.0
    %825 = vmatpush1.msra.mxu0 %v161
    %826 = vmatprep.subr.mxu0 0.0
    %827 = vmatpush1.msra.mxu0 %v162
    %828 = vmatprep.mubr.f32.mxu0 %v761
    %829 = vmatmul.mubr.f32.gmra.mrb[0].mxu0 %v760
    %v830 = vpop.f32.mrb[0].mxu0
    %v831 = vadd.f32 0.0, %v830
    %v832 = vpop.f32.mrb[0].mxu0
    %833 = vdwg.mxu0
    %v834 = vadd.f32 %v763, %v831
    %v835 = vtanh.pop %v834
    %v836 = vmul.f32 %v759, %v669
    %v837 = vsub.f32 1.0, %v759
    %v838 = vmul.f32 %v837, %v835
    %v839 = vadd.f32 %v836, %v838
    %s840 = scalar_lea.vmem [#allocation12], 24
    %841 = vst [vmem:[%s840] sm:$0xff] %v839
    %s842 = scalar_lea.vmem [#allocation3], 64
    %v843 = vld [vmem:[%s842] sm:$0xff]
    %v844 = vld [vmem:[%s842 + $0x8] sm:$0xff]
    %845 = vmatprep.subr.mxu0 %v100
    %846 = vmatpush1.msra.mxu0 %v99
    %847 = vmatprep.subr.mxu0 %v102
    %848 = vmatpush1.msra.mxu0 %v101
    %849 = vmatprep.subr.mxu0 %v104
    %850 = vmatpush1.msra.mxu0 %v103
    %851 = vmatprep.subr.mxu0 %v106
    %852 = vmatpush1.msra.mxu0 %v105
    %853 = vmatprep.subr.mxu0 %v108
    %854 = vmatpush1.msra.mxu0 %v107
    %855 = vmatprep.subr.mxu0 %v110
    %856 = vmatpush1.msra.mxu0 %v109
    %857 = vmatprep.subr.mxu0 %v112
    %858 = vmatpush1.msra.mxu0 %v111
    %859 = vmatprep.subr.mxu0 %v114
    %860 = vmatpush1.msra.mxu0 %v113
    %861 = vmatprep.subr.mxu0 %v116
    %862 = vmatpush1.msra.mxu0 %v115
    %863 = vmatprep.subr.mxu0 %v118
    %864 = vmatpush1.msra.mxu0 %v117
    %865 = vmatprep.subr.mxu0 %v120
    %866 = vmatpush1.msra.mxu0 %v119
    %867 = vmatprep.subr.mxu0 %v122
    %868 = vmatpush1.msra.mxu0 %v121
    %869 = vmatprep.subr.mxu0 %v124
    %870 = vmatpush1.msra.mxu0 %v123
    %871 = vmatprep.subr.mxu0 %v126
    %872 = vmatpush1.msra.mxu0 %v125
    %873 = vmatprep.subr.mxu0 %v128
    %874 = vmatpush1.msra.mxu0 %v127
    %875 = vmatprep.subr.mxu0 %v130
    %876 = vmatpush1.msra.mxu0 %v129
    %877 = vmatprep.subr.mxu0 0.0
    %878 = vmatpush1.msra.mxu0 0.0
    %879 = vmatprep.subr.mxu0 0.0
    %880 = vmatpush1.msra.mxu0 0.0
    %881 = vmatprep.subr.mxu0 0.0
    %882 = vmatpush1.msra.mxu0 0.0
    %883 = vmatprep.subr.mxu0 0.0
    %884 = vmatpush1.msra.mxu0 0.0
    %885 = vmatprep.subr.mxu0 0.0
    %886 = vmatpush1.msra.mxu0 0.0
    %887 = vmatprep.subr.mxu0 0.0
    %888 = vmatpush1.msra.mxu0 0.0
    %889 = vmatprep.subr.mxu0 0.0
    %890 = vmatpush1.msra.mxu0 0.0
    %891 = vmatprep.subr.mxu0 0.0
    %892 = vmatpush1.msra.mxu0 0.0
    %893 = vmatprep.subr.mxu0 0.0
    %894 = vmatpush1.msra.mxu0 0.0
    %895 = vmatprep.subr.mxu0 0.0
    %896 = vmatpush1.msra.mxu0 0.0
    %897 = vmatprep.subr.mxu0 0.0
    %898 = vmatpush1.msra.mxu0 0.0
    %899 = vmatprep.subr.mxu0 0.0
    %900 = vmatpush1.msra.mxu0 0.0
    %901 = vmatprep.subr.mxu0 0.0
    %902 = vmatpush1.msra.mxu0 0.0
    %903 = vmatprep.subr.mxu0 0.0
    %904 = vmatpush1.msra.mxu0 0.0
    %905 = vmatprep.subr.mxu0 0.0
    %906 = vmatpush1.msra.mxu0 0.0
    %907 = vmatprep.subr.mxu0 0.0
    %908 = vmatpush1.msra.mxu0 0.0
    %909 = vmatprep.mubr.f32.mxu0 0.0
    %910 = vmatmul.mubr.f32.gmra.mrb[0].mxu0 %v839
    %v911 = vpop.f32.mrb[0].mxu0
    %v912 = vadd.f32 0.0, %v911
    %v913 = vpop.f32.mrb[0].mxu0
    %v914 = vadd.f32 0.0, %v913
    %915 = vdwg.mxu0
    %v916 = vadd.f32 %v843, %v912
    %v917 = vadd.f32 %v844, %v914
    %v918 = vxor.u32 %v916, 2147483648
    %v919 = vmul.f32 %v918, 1.442695
    %v920 = vpow.pop %v919
    %v921 = vadd.f32 %v920, 1.0
    %v922 = vrcp.pop %v921
    %v923 = vmul.f32 1.0, %v922
    %v924 = vxor.u32 %v917, 2147483648
    %v925 = vmul.f32 %v924, 1.442695
    %v926 = vpow.pop %v925
    %v927 = vadd.f32 %v926, 1.0
    %v928 = vrcp.pop %v927
    %v929 = vmul.f32 1.0, %v928
    %v930 = vmul.f32 %v923, %v839
    %v931 = vmul.f32 %v923, %v163
    %s932 = scalar_lea.vmem [#allocation6], 32
    %v933 = vld [vmem:[%s932] sm:$0xff]
    %934 = vmatprep.subr.mxu0 0.0
    %935 = vmatpush1.msra.mxu0 %v131
    %936 = vmatprep.subr.mxu0 0.0
    %937 = vmatpush1.msra.mxu0 %v132
    %938 = vmatprep.subr.mxu0 0.0
    %939 = vmatpush1.msra.mxu0 %v133
    %940 = vmatprep.subr.mxu0 0.0
    %941 = vmatpush1.msra.mxu0 %v134
    %942 = vmatprep.subr.mxu0 0.0
    %943 = vmatpush1.msra.mxu0 %v135
    %944 = vmatprep.subr.mxu0 0.0
    %945 = vmatpush1.msra.mxu0 %v136
    %946 = vmatprep.subr.mxu0 0.0
    %947 = vmatpush1.msra.mxu0 %v137
    %948 = vmatprep.subr.mxu0 0.0
    %949 = vmatpush1.msra.mxu0 %v138
    %950 = vmatprep.subr.mxu0 0.0
    %951 = vmatpush1.msra.mxu0 %v139
    %952 = vmatprep.subr.mxu0 0.0
    %953 = vmatpush1.msra.mxu0 %v140
    %954 = vmatprep.subr.mxu0 0.0
    %955 = vmatpush1.msra.mxu0 %v141
    %956 = vmatprep.subr.mxu0 0.0
    %957 = vmatpush1.msra.mxu0 %v142
    %958 = vmatprep.subr.mxu0 0.0
    %959 = vmatpush1.msra.mxu0 %v143
    %960 = vmatprep.subr.mxu0 0.0
    %961 = vmatpush1.msra.mxu0 %v144
    %962 = vmatprep.subr.mxu0 0.0
    %963 = vmatpush1.msra.mxu0 %v145
    %964 = vmatprep.subr.mxu0 0.0
    %965 = vmatpush1.msra.mxu0 %v146
    %966 = vmatprep.subr.mxu0 0.0
    %967 = vmatpush1.msra.mxu0 %v147
    %968 = vmatprep.subr.mxu0 0.0
    %969 = vmatpush1.msra.mxu0 %v148
    %970 = vmatprep.subr.mxu0 0.0
    %971 = vmatpush1.msra.mxu0 %v149
    %972 = vmatprep.subr.mxu0 0.0
    %973 = vmatpush1.msra.mxu0 %v150
    %974 = vmatprep.subr.mxu0 0.0
    %975 = vmatpush1.msra.mxu0 %v151
    %976 = vmatprep.subr.mxu0 0.0
    %977 = vmatpush1.msra.mxu0 %v152
    %978 = vmatprep.subr.mxu0 0.0
    %979 = vmatpush1.msra.mxu0 %v153
    %980 = vmatprep.subr.mxu0 0.0
    %981 = vmatpush1.msra.mxu0 %v154
    %982 = vmatprep.subr.mxu0 0.0
    %983 = vmatpush1.msra.mxu0 %v155
    %984 = vmatprep.subr.mxu0 0.0
    %985 = vmatpush1.msra.mxu0 %v156
    %986 = vmatprep.subr.mxu0 0.0
    %987 = vmatpush1.msra.mxu0 %v157
    %988 = vmatprep.subr.mxu0 0.0
    %989 = vmatpush1.msra.mxu0 %v158
    %990 = vmatprep.subr.mxu0 0.0
    %991 = vmatpush1.msra.mxu0 %v159
    %992 = vmatprep.subr.mxu0 0.0
    %993 = vmatpush1.msra.mxu0 %v160
    %994 = vmatprep.subr.mxu0 0.0
    %995 = vmatpush1.msra.mxu0 %v161
    %996 = vmatprep.subr.mxu0 0.0
    %997 = vmatpush1.msra.mxu0 %v162
    %998 = vmatprep.mubr.f32.mxu0 %v931
    %999 = vmatmul.mubr.f32.gmra.mrb[0].mxu0 %v930
    %v1000 = vpop.f32.mrb[0].mxu0
    %v1001 = vadd.f32 0.0, %v1000
    %v1002 = vpop.f32.mrb[0].mxu0
    %1003 = vdwg.mxu0
    %v1004 = vadd.f32 %v933, %v1001
    %v1005 = vtanh.pop %v1004
    %v1006 = vmul.f32 %v929, %v839
    %v1007 = vsub.f32 1.0, %v929
    %v1008 = vmul.f32 %v1007, %v1005
    %v1009 = vadd.f32 %v1006, %v1008
    %s1010 = scalar_lea.vmem [#allocation12], 32
    %1011 = vst [vmem:[%s1010] sm:$0xff] %v1009
    %s1012 = scalar_lea.vmem [#allocation3], 80
    %v1013 = vld [vmem:[%s1012] sm:$0xff]
    %v1014 = vld [vmem:[%s1012 + $0x8] sm:$0xff]
    %1015 = vmatprep.subr.mxu0 %v100
    %1016 = vmatpush1.msra.mxu0 %v99
    %1017 = vmatprep.subr.mxu0 %v102
    %1018 = vmatpush1.msra.mxu0 %v101
    %1019 = vmatprep.subr.mxu0 %v104
    %1020 = vmatpush1.msra.mxu0 %v103
    %1021 = vmatprep.subr.mxu0 %v106
    %1022 = vmatpush1.msra.mxu0 %v105
    %1023 = vmatprep.subr.mxu0 %v108
    %1024 = vmatpush1.msra.mxu0 %v107
    %1025 = vmatprep.subr.mxu0 %v110
    %1026 = vmatpush1.msra.mxu0 %v109
    %1027 = vmatprep.subr.mxu0 %v112
    %1028 = vmatpush1.msra.mxu0 %v111
    %1029 = vmatprep.subr.mxu0 %v114
    %1030 = vmatpush1.msra.mxu0 %v113
    %1031 = vmatprep.subr.mxu0 %v116
    %1032 = vmatpush1.msra.mxu0 %v115
    %1033 = vmatprep.subr.mxu0 %v118
    %1034 = vmatpush1.msra.mxu0 %v117
    %1035 = vmatprep.subr.mxu0 %v120
    %1036 = vmatpush1.msra.mxu0 %v119
    %1037 = vmatprep.subr.mxu0 %v122
    %1038 = vmatpush1.msra.mxu0 %v121
    %1039 = vmatprep.subr.mxu0 %v124
    %1040 = vmatpush1.msra.mxu0 %v123
    %1041 = vmatprep.subr.mxu0 %v126
    %1042 = vmatpush1.msra.mxu0 %v125
    %1043 = vmatprep.subr.mxu0 %v128
    %1044 = vmatpush1.msra.mxu0 %v127
    %1045 = vmatprep.subr.mxu0 %v130
    %1046 = vmatpush1.msra.mxu0 %v129
    %1047 = vmatprep.subr.mxu0 0.0
    %1048 = vmatpush1.msra.mxu0 0.0
    %1049 = vmatprep.subr.mxu0 0.0
    %1050 = vmatpush1.msra.mxu0 0.0
    %1051 = vmatprep.subr.mxu0 0.0
    %1052 = vmatpush1.msra.mxu0 0.0
    %1053 = vmatprep.subr.mxu0 0.0
    %1054 = vmatpush1.msra.mxu0 0.0
    %1055 = vmatprep.subr.mxu0 0.0
    %1056 = vmatpush1.msra.mxu0 0.0
    %1057 = vmatprep.subr.mxu0 0.0
    %1058 = vmatpush1.msra.mxu0 0.0
    %1059 = vmatprep.subr.mxu0 0.0
    %1060 = vmatpush1.msra.mxu0 0.0
    %1061 = vmatprep.subr.mxu0 0.0
    %1062 = vmatpush1.msra.mxu0 0.0
    %1063 = vmatprep.subr.mxu0 0.0
    %1064 = vmatpush1.msra.mxu0 0.0
    %1065 = vmatprep.subr.mxu0 0.0
    %1066 = vmatpush1.msra.mxu0 0.0
    %1067 = vmatprep.subr.mxu0 0.0
    %1068 = vmatpush1.msra.mxu0 0.0
    %1069 = vmatprep.subr.mxu0 0.0
    %1070 = vmatpush1.msra.mxu0 0.0
    %1071 = vmatprep.subr.mxu0 0.0
    %1072 = vmatpush1.msra.mxu0 0.0
    %1073 = vmatprep.subr.mxu0 0.0
    %1074 = vmatpush1.msra.mxu0 0.0
    %1075 = vmatprep.subr.mxu0 0.0
    %1076 = vmatpush1.msra.mxu0 0.0
    %1077 = vmatprep.subr.mxu0 0.0
    %1078 = vmatpush1.msra.mxu0 0.0
    %1079 = vmatprep.mubr.f32.mxu0 0.0
    %1080 = vmatmul.mubr.f32.gmra.mrb[0].mxu0 %v1009
    %v1081 = vpop.f32.mrb[0].mxu0
    %v1082 = vadd.f32 0.0, %v1081
    %v1083 = vpop.f32.mrb[0].mxu0
    %v1084 = vadd.f32 0.0, %v1083
    %1085 = vdwg.mxu0
    %v1086 = vadd.f32 %v1013, %v1082
    %v1087 = vadd.f32 %v1014, %v1084
    %v1088 = vxor.u32 %v1086, 2147483648
    %v1089 = vmul.f32 %v1088, 1.442695
    %v1090 = vpow.pop %v1089
    %v1091 = vadd.f32 %v1090, 1.0
    %v1092 = vrcp.pop %v1091
    %v1093 = vmul.f32 1.0, %v1092
    %v1094 = vxor.u32 %v1087, 2147483648
    %v1095 = vmul.f32 %v1094, 1.442695
    %v1096 = vpow.pop %v1095
    %v1097 = vadd.f32 %v1096, 1.0
    %v1098 = vrcp.pop %v1097
    %v1099 = vmul.f32 1.0, %v1098
    %v1100 = vmul.f32 %v1093, %v1009
    %v1101 = vmul.f32 %v1093, %v163
    %s1102 = scalar_lea.vmem [#allocation6], 40
    %v1103 = vld [vmem:[%s1102] sm:$0xff]
    %1104 = vmatprep.subr.mxu0 0.0
    %1105 = vmatpush1.msra.mxu0 %v131
    %1106 = vmatprep.subr.mxu0 0.0
    %1107 = vmatpush1.msra.mxu0 %v132
    %1108 = vmatprep.subr.mxu0 0.0
    %1109 = vmatpush1.msra.mxu0 %v133
    %1110 = vmatprep.subr.mxu0 0.0
    %1111 = vmatpush1.msra.mxu0 %v134
    %1112 = vmatprep.subr.mxu0 0.0
    %1113 = vmatpush1.msra.mxu0 %v135
    %1114 = vmatprep.subr.mxu0 0.0
    %1115 = vmatpush1.msra.mxu0 %v136
    %1116 = vmatprep.subr.mxu0 0.0
    %1117 = vmatpush1.msra.mxu0 %v137
    %1118 = vmatprep.subr.mxu0 0.0
    %1119 = vmatpush1.msra.mxu0 %v138
    %1120 = vmatprep.subr.mxu0 0.0
    %1121 = vmatpush1.msra.mxu0 %v139
    %1122 = vmatprep.subr.mxu0 0.0
    %1123 = vmatpush1.msra.mxu0 %v140
    %1124 = vmatprep.subr.mxu0 0.0
    %1125 = vmatpush1.msra.mxu0 %v141
    %1126 = vmatprep.subr.mxu0 0.0
    %1127 = vmatpush1.msra.mxu0 %v142
    %1128 = vmatprep.subr.mxu0 0.0
    %1129 = vmatpush1.msra.mxu0 %v143
    %1130 = vmatprep.subr.mxu0 0.0
    %1131 = vmatpush1.msra.mxu0 %v144
    %1132 = vmatprep.subr.mxu0 0.0
    %1133 = vmatpush1.msra.mxu0 %v145
    %1134 = vmatprep.subr.mxu0 0.0
    %1135 = vmatpush1.msra.mxu0 %v146
    %1136 = vmatprep.subr.mxu0 0.0
    %1137 = vmatpush1.msra.mxu0 %v147
    %1138 = vmatprep.subr.mxu0 0.0
    %1139 = vmatpush1.msra.mxu0 %v148
    %1140 = vmatprep.subr.mxu0 0.0
    %1141 = vmatpush1.msra.mxu0 %v149
    %1142 = vmatprep.subr.mxu0 0.0
    %1143 = vmatpush1.msra.mxu0 %v150
    %1144 = vmatprep.subr.mxu0 0.0
    %1145 = vmatpush1.msra.mxu0 %v151
    %1146 = vmatprep.subr.mxu0 0.0
    %1147 = vmatpush1.msra.mxu0 %v152
    %1148 = vmatprep.subr.mxu0 0.0
    %1149 = vmatpush1.msra.mxu0 %v153
    %1150 = vmatprep.subr.mxu0 0.0
    %1151 = vmatpush1.msra.mxu0 %v154
    %1152 = vmatprep.subr.mxu0 0.0
    %1153 = vmatpush1.msra.mxu0 %v155
    %1154 = vmatprep.subr.mxu0 0.0
    %1155 = vmatpush1.msra.mxu0 %v156
    %1156 = vmatprep.subr.mxu0 0.0
    %1157 = vmatpush1.msra.mxu0 %v157
    %1158 = vmatprep.subr.mxu0 0.0
    %1159 = vmatpush1.msra.mxu0 %v158
    %1160 = vmatprep.subr.mxu0 0.0
    %1161 = vmatpush1.msra.mxu0 %v159
    %1162 = vmatprep.subr.mxu0 0.0
    %1163 = vmatpush1.msra.mxu0 %v160
    %1164 = vmatprep.subr.mxu0 0.0
    %1165 = vmatpush1.msra.mxu0 %v161
    %1166 = vmatprep.subr.mxu0 0.0
    %1167 = vmatpush1.msra.mxu0 %v162
    %1168 = vmatprep.mubr.f32.mxu0 %v1101
    %1169 = vmatmul.mubr.f32.gmra.mrb[0].mxu0 %v1100
    %v1170 = vpop.f32.mrb[0].mxu0
    %v1171 = vadd.f32 0.0, %v1170
    %v1172 = vpop.f32.mrb[0].mxu0
    %1173 = vdwg.mxu0
    %v1174 = vadd.f32 %v1103, %v1171
    %v1175 = vtanh.pop %v1174
    %v1176 = vmul.f32 %v1099, %v1009
    %v1177 = vsub.f32 1.0, %v1099
    %v1178 = vmul.f32 %v1177, %v1175
    %v1179 = vadd.f32 %v1176, %v1178
    %s1180 = scalar_lea.vmem [#allocation12], 40
    %1181 = vst [vmem:[%s1180] sm:$0xff] %v1179
    %s1182 = scalar_lea.vmem [#allocation3], 96
    %v1183 = vld [vmem:[%s1182] sm:$0xff]
    %v1184 = vld [vmem:[%s1182 + $0x8] sm:$0xff]
    %1185 = vmatprep.subr.mxu0 %v100
    %1186 = vmatpush1.msra.mxu0 %v99
    %1187 = vmatprep.subr.mxu0 %v102
    %1188 = vmatpush1.msra.mxu0 %v101
    %1189 = vmatprep.subr.mxu0 %v104
    %1190 = vmatpush1.msra.mxu0 %v103
    %1191 = vmatprep.subr.mxu0 %v106
    %1192 = vmatpush1.msra.mxu0 %v105
    %1193 = vmatprep.subr.mxu0 %v108
    %1194 = vmatpush1.msra.mxu0 %v107
    %1195 = vmatprep.subr.mxu0 %v110
    %1196 = vmatpush1.msra.mxu0 %v109
    %1197 = vmatprep.subr.mxu0 %v112
    %1198 = vmatpush1.msra.mxu0 %v111
    %1199 = vmatprep.subr.mxu0 %v114
    %1200 = vmatpush1.msra.mxu0 %v113
    %1201 = vmatprep.subr.mxu0 %v116
    %1202 = vmatpush1.msra.mxu0 %v115
    %1203 = vmatprep.subr.mxu0 %v118
    %1204 = vmatpush1.msra.mxu0 %v117
    %1205 = vmatprep.subr.mxu0 %v120
    %1206 = vmatpush1.msra.mxu0 %v119
    %1207 = vmatprep.subr.mxu0 %v122
    %1208 = vmatpush1.msra.mxu0 %v121
    %1209 = vmatprep.subr.mxu0 %v124
    %1210 = vmatpush1.msra.mxu0 %v123
    %1211 = vmatprep.subr.mxu0 %v126
    %1212 = vmatpush1.msra.mxu0 %v125
    %1213 = vmatprep.subr.mxu0 %v128
    %1214 = vmatpush1.msra.mxu0 %v127
    %1215 = vmatprep.subr.mxu0 %v130
    %1216 = vmatpush1.msra.mxu0 %v129
    %1217 = vmatprep.subr.mxu0 0.0
    %1218 = vmatpush1.msra.mxu0 0.0
    %1219 = vmatprep.subr.mxu0 0.0
    %1220 = vmatpush1.msra.mxu0 0.0
    %1221 = vmatprep.subr.mxu0 0.0
    %1222 = vmatpush1.msra.mxu0 0.0
    %1223 = vmatprep.subr.mxu0 0.0
    %1224 = vmatpush1.msra.mxu0 0.0
    %1225 = vmatprep.subr.mxu0 0.0
    %1226 = vmatpush1.msra.mxu0 0.0
    %1227 = vmatprep.subr.mxu0 0.0
    %1228 = vmatpush1.msra.mxu0 0.0
    %1229 = vmatprep.subr.mxu0 0.0
    %1230 = vmatpush1.msra.mxu0 0.0
    %1231 = vmatprep.subr.mxu0 0.0
    %1232 = vmatpush1.msra.mxu0 0.0
    %1233 = vmatprep.subr.mxu0 0.0
    %1234 = vmatpush1.msra.mxu0 0.0
    %1235 = vmatprep.subr.mxu0 0.0
    %1236 = vmatpush1.msra.mxu0 0.0
    %1237 = vmatprep.subr.mxu0 0.0
    %1238 = vmatpush1.msra.mxu0 0.0
    %1239 = vmatprep.subr.mxu0 0.0
    %1240 = vmatpush1.msra.mxu0 0.0
    %1241 = vmatprep.subr.mxu0 0.0
    %1242 = vmatpush1.msra.mxu0 0.0
    %1243 = vmatprep.subr.mxu0 0.0
    %1244 = vmatpush1.msra.mxu0 0.0
    %1245 = vmatprep.subr.mxu0 0.0
    %1246 = vmatpush1.msra.mxu0 0.0
    %1247 = vmatprep.subr.mxu0 0.0
    %1248 = vmatpush1.msra.mxu0 0.0
    %1249 = vmatprep.mubr.f32.mxu0 0.0
    %1250 = vmatmul.mubr.f32.gmra.mrb[0].mxu0 %v1179
    %v1251 = vpop.f32.mrb[0].mxu0
    %v1252 = vadd.f32 0.0, %v1251
    %v1253 = vpop.f32.mrb[0].mxu0
    %v1254 = vadd.f32 0.0, %v1253
    %1255 = vdwg.mxu0
    %v1256 = vadd.f32 %v1183, %v1252
    %v1257 = vadd.f32 %v1184, %v1254
    %v1258 = vxor.u32 %v1256, 2147483648
    %v1259 = vmul.f32 %v1258, 1.442695
    %v1260 = vpow.pop %v1259
    %v1261 = vadd.f32 %v1260, 1.0
    %v1262 = vrcp.pop %v1261
    %v1263 = vmul.f32 1.0, %v1262
    %v1264 = vxor.u32 %v1257, 2147483648
    %v1265 = vmul.f32 %v1264, 1.442695
    %v1266 = vpow.pop %v1265
    %v1267 = vadd.f32 %v1266, 1.0
    %v1268 = vrcp.pop %v1267
    %v1269 = vmul.f32 1.0, %v1268
    %v1270 = vmul.f32 %v1263, %v1179
    %v1271 = vmul.f32 %v1263, %v163
    %s1272 = scalar_lea.vmem [#allocation6], 48
    %v1273 = vld [vmem:[%s1272] sm:$0xff]
    %1274 = vmatprep.subr.mxu0 0.0
    %1275 = vmatpush1.msra.mxu0 %v131
    %1276 = vmatprep.subr.mxu0 0.0
    %1277 = vmatpush1.msra.mxu0 %v132
    %1278 = vmatprep.subr.mxu0 0.0
    %1279 = vmatpush1.msra.mxu0 %v133
    %1280 = vmatprep.subr.mxu0 0.0
    %1281 = vmatpush1.msra.mxu0 %v134
    %1282 = vmatprep.subr.mxu0 0.0
    %1283 = vmatpush1.msra.mxu0 %v135
    %1284 = vmatprep.subr.mxu0 0.0
    %1285 = vmatpush1.msra.mxu0 %v136
    %1286 = vmatprep.subr.mxu0 0.0
    %1287 = vmatpush1.msra.mxu0 %v137
    %1288 = vmatprep.subr.mxu0 0.0
    %1289 = vmatpush1.msra.mxu0 %v138
    %1290 = vmatprep.subr.mxu0 0.0
    %1291 = vmatpush1.msra.mxu0 %v139
    %1292 = vmatprep.subr.mxu0 0.0
    %1293 = vmatpush1.msra.mxu0 %v140
    %1294 = vmatprep.subr.mxu0 0.0
    %1295 = vmatpush1.msra.mxu0 %v141
    %1296 = vmatprep.subr.mxu0 0.0
    %1297 = vmatpush1.msra.mxu0 %v142
    %1298 = vmatprep.subr.mxu0 0.0
    %1299 = vmatpush1.msra.mxu0 %v143
    %1300 = vmatprep.subr.mxu0 0.0
    %1301 = vmatpush1.msra.mxu0 %v144
    %1302 = vmatprep.subr.mxu0 0.0
    %1303 = vmatpush1.msra.mxu0 %v145
    %1304 = vmatprep.subr.mxu0 0.0
    %1305 = vmatpush1.msra.mxu0 %v146
    %1306 = vmatprep.subr.mxu0 0.0
    %1307 = vmatpush1.msra.mxu0 %v147
    %1308 = vmatprep.subr.mxu0 0.0
    %1309 = vmatpush1.msra.mxu0 %v148
    %1310 = vmatprep.subr.mxu0 0.0
    %1311 = vmatpush1.msra.mxu0 %v149
    %1312 = vmatprep.subr.mxu0 0.0
    %1313 = vmatpush1.msra.mxu0 %v150
    %1314 = vmatprep.subr.mxu0 0.0
    %1315 = vmatpush1.msra.mxu0 %v151
    %1316 = vmatprep.subr.mxu0 0.0
    %1317 = vmatpush1.msra.mxu0 %v152
    %1318 = vmatprep.subr.mxu0 0.0
    %1319 = vmatpush1.msra.mxu0 %v153
    %1320 = vmatprep.subr.mxu0 0.0
    %1321 = vmatpush1.msra.mxu0 %v154
    %1322 = vmatprep.subr.mxu0 0.0
    %1323 = vmatpush1.msra.mxu0 %v155
    %1324 = vmatprep.subr.mxu0 0.0
    %1325 = vmatpush1.msra.mxu0 %v156
    %1326 = vmatprep.subr.mxu0 0.0
    %1327 = vmatpush1.msra.mxu0 %v157
    %1328 = vmatprep.subr.mxu0 0.0
    %1329 = vmatpush1.msra.mxu0 %v158
    %1330 = vmatprep.subr.mxu0 0.0
    %1331 = vmatpush1.msra.mxu0 %v159
    %1332 = vmatprep.subr.mxu0 0.0
    %1333 = vmatpush1.msra.mxu0 %v160
    %1334 = vmatprep.subr.mxu0 0.0
    %1335 = vmatpush1.msra.mxu0 %v161
    %1336 = vmatprep.subr.mxu0 0.0
    %1337 = vmatpush1.msra.mxu0 %v162
    %1338 = vmatprep.mubr.f32.mxu0 %v1271
    %1339 = vmatmul.mubr.f32.gmra.mrb[0].mxu0 %v1270
    %v1340 = vpop.f32.mrb[0].mxu0
    %v1341 = vadd.f32 0.0, %v1340
    %v1342 = vpop.f32.mrb[0].mxu0
    %1343 = vdwg.mxu0
    %v1344 = vadd.f32 %v1273, %v1341
    %v1345 = vtanh.pop %v1344
    %v1346 = vmul.f32 %v1269, %v1179
    %v1347 = vsub.f32 1.0, %v1269
    %v1348 = vmul.f32 %v1347, %v1345
    %v1349 = vadd.f32 %v1346, %v1348
    %s1350 = scalar_lea.vmem [#allocation12], 48
    %1351 = vst [vmem:[%s1350] sm:$0xff] %v1349
    %s1352 = scalar_lea.vmem [#allocation3], 112
    %v1353 = vld [vmem:[%s1352] sm:$0xff]
    %v1354 = vld [vmem:[%s1352 + $0x8] sm:$0xff]
    %1355 = vmatprep.subr.mxu0 %v100
    %1356 = vmatpush1.msra.mxu0 %v99
    %1357 = vmatprep.subr.mxu0 %v102
    %1358 = vmatpush1.msra.mxu0 %v101
    %1359 = vmatprep.subr.mxu0 %v104
    %1360 = vmatpush1.msra.mxu0 %v103
    %1361 = vmatprep.subr.mxu0 %v106
    %1362 = vmatpush1.msra.mxu0 %v105
    %1363 = vmatprep.subr.mxu0 %v108
    %1364 = vmatpush1.msra.mxu0 %v107
    %1365 = vmatprep.subr.mxu0 %v110
    %1366 = vmatpush1.msra.mxu0 %v109
    %1367 = vmatprep.subr.mxu0 %v112
    %1368 = vmatpush1.msra.mxu0 %v111
    %1369 = vmatprep.subr.mxu0 %v114
    %1370 = vmatpush1.msra.mxu0 %v113
    %1371 = vmatprep.subr.mxu0 %v116
    %1372 = vmatpush1.msra.mxu0 %v115
    %1373 = vmatprep.subr.mxu0 %v118
    %1374 = vmatpush1.msra.mxu0 %v117
    %1375 = vmatprep.subr.mxu0 %v120
    %1376 = vmatpush1.msra.mxu0 %v119
    %1377 = vmatprep.subr.mxu0 %v122
    %1378 = vmatpush1.msra.mxu0 %v121
    %1379 = vmatprep.subr.mxu0 %v124
    %1380 = vmatpush1.msra.mxu0 %v123
    %1381 = vmatprep.subr.mxu0 %v126
    %1382 = vmatpush1.msra.mxu0 %v125
    %1383 = vmatprep.subr.mxu0 %v128
    %1384 = vmatpush1.msra.mxu0 %v127
    %1385 = vmatprep.subr.mxu0 %v130
    %1386 = vmatpush1.msra.mxu0 %v129
    %1387 = vmatprep.subr.mxu0 0.0
    %1388 = vmatpush1.msra.mxu0 0.0
    %1389 = vmatprep.subr.mxu0 0.0
    %1390 = vmatpush1.msra.mxu0 0.0
    %1391 = vmatprep.subr.mxu0 0.0
    %1392 = vmatpush1.msra.mxu0 0.0
    %1393 = vmatprep.subr.mxu0 0.0
    %1394 = vmatpush1.msra.mxu0 0.0
    %1395 = vmatprep.subr.mxu0 0.0
    %1396 = vmatpush1.msra.mxu0 0.0
    %1397 = vmatprep.subr.mxu0 0.0
    %1398 = vmatpush1.msra.mxu0 0.0
    %1399 = vmatprep.subr.mxu0 0.0
    %1400 = vmatpush1.msra.mxu0 0.0
    %1401 = vmatprep.subr.mxu0 0.0
    %1402 = vmatpush1.msra.mxu0 0.0
    %1403 = vmatprep.subr.mxu0 0.0
    %1404 = vmatpush1.msra.mxu0 0.0
    %1405 = vmatprep.subr.mxu0 0.0
    %1406 = vmatpush1.msra.mxu0 0.0
    %1407 = vmatprep.subr.mxu0 0.0
    %1408 = vmatpush1.msra.mxu0 0.0
    %1409 = vmatprep.subr.mxu0 0.0
    %1410 = vmatpush1.msra.mxu0 0.0
    %1411 = vmatprep.subr.mxu0 0.0
    %1412 = vmatpush1.msra.mxu0 0.0
    %1413 = vmatprep.subr.mxu0 0.0
    %1414 = vmatpush1.msra.mxu0 0.0
    %1415 = vmatprep.subr.mxu0 0.0
    %1416 = vmatpush1.msra.mxu0 0.0
    %1417 = vmatprep.subr.mxu0 0.0
    %1418 = vmatpush1.msra.mxu0 0.0
    %1419 = vmatprep.mubr.f32.mxu0 0.0
    %1420 = vmatmul.mubr.f32.gmra.mrb[0].mxu0 %v1349
    %v1421 = vpop.f32.mrb[0].mxu0
    %v1422 = vadd.f32 0.0, %v1421
    %v1423 = vpop.f32.mrb[0].mxu0
    %v1424 = vadd.f32 0.0, %v1423
    %1425 = vdwg.mxu0
    %v1426 = vadd.f32 %v1353, %v1422
    %v1427 = vadd.f32 %v1354, %v1424
    %v1428 = vxor.u32 %v1426, 2147483648
    %v1429 = vmul.f32 %v1428, 1.442695
    %v1430 = vpow.pop %v1429
    %v1431 = vadd.f32 %v1430, 1.0
    %v1432 = vrcp.pop %v1431
    %v1433 = vmul.f32 1.0, %v1432
    %v1434 = vxor.u32 %v1427, 2147483648
    %v1435 = vmul.f32 %v1434, 1.442695
    %v1436 = vpow.pop %v1435
    %v1437 = vadd.f32 %v1436, 1.0
    %v1438 = vrcp.pop %v1437
    %v1439 = vmul.f32 1.0, %v1438
    %v1440 = vmul.f32 %v1433, %v1349
    %v1441 = vmul.f32 %v1433, %v163
    %s1442 = scalar_lea.vmem [#allocation6], 56
    %v1443 = vld [vmem:[%s1442] sm:$0xff]
    %1444 = vmatprep.subr.mxu0 0.0
    %1445 = vmatpush1.msra.mxu0 %v131
    %1446 = vmatprep.subr.mxu0 0.0
    %1447 = vmatpush1.msra.mxu0 %v132
    %1448 = vmatprep.subr.mxu0 0.0
    %1449 = vmatpush1.msra.mxu0 %v133
    %1450 = vmatprep.subr.mxu0 0.0
    %1451 = vmatpush1.msra.mxu0 %v134
    %1452 = vmatprep.subr.mxu0 0.0
    %1453 = vmatpush1.msra.mxu0 %v135
    %1454 = vmatprep.subr.mxu0 0.0
    %1455 = vmatpush1.msra.mxu0 %v136
    %1456 = vmatprep.subr.mxu0 0.0
    %1457 = vmatpush1.msra.mxu0 %v137
    %1458 = vmatprep.subr.mxu0 0.0
    %1459 = vmatpush1.msra.mxu0 %v138
    %1460 = vmatprep.subr.mxu0 0.0
    %1461 = vmatpush1.msra.mxu0 %v139
    %1462 = vmatprep.subr.mxu0 0.0
    %1463 = vmatpush1.msra.mxu0 %v140
    %1464 = vmatprep.subr.mxu0 0.0
    %1465 = vmatpush1.msra.mxu0 %v141
    %1466 = vmatprep.subr.mxu0 0.0
    %1467 = vmatpush1.msra.mxu0 %v142
    %1468 = vmatprep.subr.mxu0 0.0
    %1469 = vmatpush1.msra.mxu0 %v143
    %1470 = vmatprep.subr.mxu0 0.0
    %1471 = vmatpush1.msra.mxu0 %v144
    %1472 = vmatprep.subr.mxu0 0.0
    %1473 = vmatpush1.msra.mxu0 %v145
    %1474 = vmatprep.subr.mxu0 0.0
    %1475 = vmatpush1.msra.mxu0 %v146
    %1476 = vmatprep.subr.mxu0 0.0
    %1477 = vmatpush1.msra.mxu0 %v147
    %1478 = vmatprep.subr.mxu0 0.0
    %1479 = vmatpush1.msra.mxu0 %v148
    %1480 = vmatprep.subr.mxu0 0.0
    %1481 = vmatpush1.msra.mxu0 %v149
    %1482 = vmatprep.subr.mxu0 0.0
    %1483 = vmatpush1.msra.mxu0 %v150
    %1484 = vmatprep.subr.mxu0 0.0
    %1485 = vmatpush1.msra.mxu0 %v151
    %1486 = vmatprep.subr.mxu0 0.0
    %1487 = vmatpush1.msra.mxu0 %v152
    %1488 = vmatprep.subr.mxu0 0.0
    %1489 = vmatpush1.msra.mxu0 %v153
    %1490 = vmatprep.subr.mxu0 0.0
    %1491 = vmatpush1.msra.mxu0 %v154
    %1492 = vmatprep.subr.mxu0 0.0
    %1493 = vmatpush1.msra.mxu0 %v155
    %1494 = vmatprep.subr.mxu0 0.0
    %1495 = vmatpush1.msra.mxu0 %v156
    %1496 = vmatprep.subr.mxu0 0.0
    %1497 = vmatpush1.msra.mxu0 %v157
    %1498 = vmatprep.subr.mxu0 0.0
    %1499 = vmatpush1.msra.mxu0 %v158
    %1500 = vmatprep.subr.mxu0 0.0
    %1501 = vmatpush1.msra.mxu0 %v159
    %1502 = vmatprep.subr.mxu0 0.0
    %1503 = vmatpush1.msra.mxu0 %v160
    %1504 = vmatprep.subr.mxu0 0.0
    %1505 = vmatpush1.msra.mxu0 %v161
    %1506 = vmatprep.subr.mxu0 0.0
    %1507 = vmatpush1.msra.mxu0 %v162
    %1508 = vmatprep.mubr.f32.mxu0 %v1441
    %1509 = vmatmul.mubr.f32.gmra.mrb[0].mxu0 %v1440
    %v1510 = vpop.f32.mrb[0].mxu0
    %v1511 = vadd.f32 0.0, %v1510
    %v1512 = vpop.f32.mrb[0].mxu0
    %1513 = vdwg.mxu0
    %v1514 = vadd.f32 %v1443, %v1511
    %v1515 = vtanh.pop %v1514
    %v1516 = vmul.f32 %v1439, %v1349
    %v1517 = vsub.f32 1.0, %v1439
    %v1518 = vmul.f32 %v1517, %v1515
    %v1519 = vadd.f32 %v1516, %v1518
    %s1520 = scalar_lea.vmem [#allocation12], 56
    %1521 = vst [vmem:[%s1520] sm:$0xff] %v1519
    %1522 = vst [vmem:[#allocation2] sm:$0xff] %v1519
    // Predicated region
    $region50: #{tpu_custom_call.1} parent=1 // pred_check
      %p1523 = pneg %p93
    $region51: #{tpu_custom_call.1} parent=1 // pred_check_branch
      %1525 = sbr.rel (%p1523) target = $region53
    $region52: #{tpu_custom_call.1} parent=1 // pred_region
      %1526 = vst [vmem:[#allocation13] sm:$0xff] %v1519
    $region53: #{tpu_custom_call.1} parent=1 // pred_fallthru
      _
    // Predicated region
    $region54: #{tpu_custom_call.1} parent=1 // pred_check
      _
    $region55: #{tpu_custom_call.1} parent=1 // pred_check_branch
      %1528 = sbr.rel (0) target = $region57
    $region56: #{tpu_custom_call.1} parent=1 // pred_region
      %s1530 = ssub.s32 1024, 1024
      %1531 = vsyncadd [#allocation5], %s1530
      %s1532 = sshll.u32 [#allocation12], 4
      %s1533 = int_to_ptr.vmem [resolvable:$true] %s1532
      %1538 = dma.vmem_to_hbm [thread:$0]  %s1533, 1024, %s6, [#allocation5], 128, 128, 8
    $region57: #{tpu_custom_call.1} parent=1 // pred_fallthru
      _
    // Predicated region
    $region58: #{tpu_custom_call.1} parent=1 // pred_check
      _
    $region59: #{tpu_custom_call.1} parent=1 // pred_check_branch
      %1540 = sbr.rel (0) target = $region61
    $region60: #{tpu_custom_call.1} parent=1 // pred_region
      %s1542 = ssub.s32 128, 128
      %1543 = vsyncadd [#allocation14], %s1542
      %s1545 = sshll.u32 [#allocation13], 4
      %s1546 = int_to_ptr.vmem [resolvable:$true] %s1545
      %1548 = dma.vmem_to_hbm [thread:$0]  %s1546, 128, %s7, [#allocation14]
    $region61: #{tpu_custom_call.1} parent=1 // pred_fallthru
      _
    // Predicated region
    $region62: #{tpu_custom_call.1} parent=1 // pred_check
      _
    $region63: #{tpu_custom_call.1} parent=1 // pred_check_branch
      %1550 = sbr.rel (0) target = $region65
    $region64: #{tpu_custom_call.1} parent=1 // pred_region
      %1551 = dma.done [#allocation5], 1024
    $region65: #{tpu_custom_call.1} parent=1 // pred_fallthru
      _
    // Predicated region
    $region66: #{tpu_custom_call.1} parent=1 // pred_check
      _
    $region67: #{tpu_custom_call.1} parent=1 // pred_check_branch
      %1553 = sbr.rel (0) target = $region69
    $region68: #{tpu_custom_call.1} parent=1 // pred_region
      %1554 = dma.done [#allocation14], 128
    $region69: #{tpu_custom_call.1} parent=1 // pred_fallthru
      _
    %1555 = vsyncpa [#allocation4], 1
    %1556 = vsyncpa [#allocation7], 1
    %1557 = vsyncpa [#allocation10], 1
    %1558 = vsyncpa [#allocation5], 1
    %1559 = vsyncpa [#allocation14], 1

</llo_original>
